<compile_context>
chip_gen: v6e
topology: v6e:2x2x1
jax: 0.10.0
libtpu: 0.0.40
codegen_flags: <defaults>
</compile_context>

<pallas_src>
import functools
import math

import jax
import jax.numpy as jnp
import numpy as np
from jax import lax
from jax.experimental import pallas as pl
from jax.experimental.pallas import tpu as pltpu


def _round_up(x, m):
    return (x + m - 1) // m * m


def _ctrnn_fused_kernel(h0_ref, vel_ref, w_in_ref, w_rec_ref, w_out_ref,
                        bias_ref, out_ref, h_scratch,
                        *, alpha, t_block, d_in, d_out, unroll):
    """One (N_BLOCK, T_BLOCK) tile of the fused recurrence.

    h0_ref    : (N_BLOCK, Hp)           initial hidden state for this batch block
    vel_ref   : (T_BLOCK, N_BLOCK, Din) raw velocity inputs
    w_in_ref  : (Din, Hp)               input weights   (resident)
    w_rec_ref : (Hp, Hp)                recurrent weights (resident)
    w_out_ref : (Hp, Dout_pad)          output weights, lane-padded (resident)
    bias_ref  : (1, Hp)                 bias             (resident)
    out_ref   : (T_BLOCK, N_BLOCK, Dout) predictions
    h_scratch : (N_BLOCK, Hp) VMEM      hidden state carried across time blocks
    """
    tb = pl.program_id(1)

    # First time-block of each batch block: seed the carried hidden state.
    @pl.when(tb == 0)
    def _():
        h_scratch[...] = h0_ref[...].astype(jnp.float32)

    # Loop-invariant loads / constants hoisted out of the time loop.
    w_in = w_in_ref[...]
    w_rec = w_rec_ref[...]
    w_out = w_out_ref[...]
    bias = bias_ref[...]
    beta = 1.0 - alpha

    def project_input(i):
        # x_t @ W_in for one timestep. Din is tiny for this model, so use a
        # VPU broadcast-multiply (exact, no MXU K=1 corner case); fall back to
        # the MXU for wider inputs.
        v = vel_ref[i]                                   # (N_BLOCK, Din)
        if d_in <= 4:
            acc = v[:, 0:1] * w_in[0:1, :]
            for d in range(1, d_in):
                acc = acc + v[:, d:d + 1] * w_in[d:d + 1, :]
            return acc
        return jnp.dot(v, w_in, preferred_element_type=jnp.float32)

    def body(i, h):
        act = jnp.maximum(jnp.tanh(h), 0.0)
        rec = jnp.dot(act.astype(w_rec.dtype), w_rec,
                      preferred_element_type=jnp.float32)
        h_new = beta * h + alpha * (rec + project_input(i) + bias)
        hact = jnp.maximum(jnp.tanh(h_new), 0.0)
        # Output head: full-width (lane-padded) matmul, slice the real columns.
        out_full = jnp.dot(hact.astype(w_out.dtype), w_out,
                           preferred_element_type=jnp.float32)
        out_ref[i] = out_full[:, :d_out]
        return h_new

    # Sequential in-kernel time loop; h stays in vregs for the whole block,
    # one scratch load/store per block.  Partially unrolled for LLO visibility.
    h_scratch[...] = lax.fori_loop(0, t_block, body, h_scratch[...],
                                   unroll=unroll)


def ctrnn_forward(initdir, velocities, fc_w, fc_b, w_in, w_rec, w_out, bias,
                  alpha=0.1, rec_dtype=jnp.float32):
    """
    initdir    : (1, N, init_dim)
    velocities : (T, N, Din)
    fc_w       : (init_dim, H)   -- transposed torch Linear weight
    fc_b       : (1, H)
    w_in       : (Din, H)
    w_rec      : (H, H)
    w_out      : (H, Dout)
    bias       : (1, H)
    returns    : (T, N, Dout)

    rec_dtype: dtype of the resident matmul operands (jnp.bfloat16 is an option
               on v6e/v7x for speed; h itself always stays f32).
    """
    T, N, Din = velocities.shape
    init_dim = initdir.shape[-1]
    H = w_rec.shape[0]
    Dout = w_out.shape[1]

    f32 = jnp.float32
    initdir2d = initdir.reshape(N, init_dim).astype(f32)

    # ---- XLA prologue: one-off h0. ----
    h0 = initdir2d @ fc_w.astype(f32) + fc_b.astype(f32)          # (N, H)

    # ---- Padding / tiling. ----
    H_pad = _round_up(H, 128)                 # lane-dense hidden dimension
    Dout_pad = _round_up(Dout, 128)           # lane-padded output head weights
    n_pad8 = _round_up(N, 8)                  # sublane minimum
    n_block = min(n_pad8, 128)
    N_pad = _round_up(n_pad8, n_block)
    t_block = min(T, 128)
    T_pad = _round_up(T, t_block)

    h0_p = jnp.pad(h0, ((0, N_pad - N), (0, H_pad - H)))
    vel_p = jnp.pad(velocities.astype(f32),
                    ((0, T_pad - T), (0, N_pad - N), (0, 0)))
    w_in_p = jnp.pad(w_in.astype(f32), ((0, 0), (0, H_pad - H)))
    w_rec_p = jnp.pad(w_rec.astype(rec_dtype),
                      ((0, H_pad - H), (0, H_pad - H)))
    w_out_p = jnp.pad(w_out.astype(rec_dtype),
                      ((0, H_pad - H), (0, Dout_pad - Dout)))
    bias_p = jnp.pad(bias.reshape(1, H).astype(f32), ((0, 0), (0, H_pad - H)))

    grid = (N_pad // n_block, T_pad // t_block)

    kernel = functools.partial(_ctrnn_fused_kernel,
                               alpha=float(alpha),
                               t_block=t_block,
                               d_in=Din,
                               d_out=Dout,
                               unroll=min(t_block, 8))

    out_p = pl.pallas_call(
        kernel,
        out_shape=jax.ShapeDtypeStruct((T_pad, N_pad, Dout), f32),
        grid_spec=pltpu.PrefetchScalarGridSpec(
            num_scalar_prefetch=0,
            grid=grid,
            in_specs=[
                pl.BlockSpec((n_block, H_pad), lambda nb, tb: (nb, 0)),       # h0
                pl.BlockSpec((t_block, n_block, Din),
                             lambda nb, tb: (tb, nb, 0)),                     # velocities
                pl.BlockSpec((Din, H_pad), lambda nb, tb: (0, 0)),            # W_in
                pl.BlockSpec((H_pad, H_pad), lambda nb, tb: (0, 0)),          # W_rec
                pl.BlockSpec((H_pad, Dout_pad), lambda nb, tb: (0, 0)),       # W_out
                pl.BlockSpec((1, H_pad), lambda nb, tb: (0, 0)),              # bias
            ],
            out_specs=pl.BlockSpec((t_block, n_block, Dout),
                                   lambda nb, tb: (tb, nb, 0)),
            scratch_shapes=[pltpu.VMEM((n_block, H_pad), f32)],  # carried hidden state
        ),
        compiler_params=pltpu.CompilerParams(
            dimension_semantics=("parallel", "arbitrary")),
    )(h0_p, vel_p, w_in_p, w_rec_p, w_out_p, bias_p)

    # ---- Drop padding. ----
    return out_p[:T, :N, :]


def ctrnn_reference(initdir, velocities, fc_w, fc_b, w_in, w_rec, w_out, bias,
                    alpha=0.1):
    """Pure-JAX reference mirroring the PyTorch forward() (f32, high precision)."""
    hp = lax.Precision.HIGHEST
    T, N, Din = velocities.shape
    h0 = jnp.dot(initdir.reshape(N, -1), fc_w, precision=hp) + fc_b
    hs = []
    prev = h0
    for t in range(T):
        act = jnp.maximum(jnp.tanh(prev), 0.0)
        new_h = (1.0 - alpha) * prev + alpha * (
            jnp.dot(act, w_rec, precision=hp)
            + jnp.dot(velocities[t], w_in, precision=hp)
            + bias)
        hs.append(new_h)
        prev = new_h
    h = jnp.stack(hs, axis=0)
    h = jnp.maximum(jnp.tanh(h), 0.0)
    return jnp.einsum('tnh,ho->tno', h, w_out, precision=hp)


def _make_params(key, init_dim, input_dim, hidden_dim, output_dim):
    k = jax.random.split(key, 6)
    fc_w = (0.1 / math.sqrt(hidden_dim)) * jax.random.normal(
        k[0], (init_dim, hidden_dim), jnp.float32)          # transposed Linear W
    fc_b = jnp.zeros((1, hidden_dim), jnp.float32)
    w_in = (0.1 / math.sqrt(input_dim)) * jax.random.normal(
        k[1], (input_dim, hidden_dim), jnp.float32)
    w_rec = (0.1 / math.sqrt(hidden_dim)) * jax.random.normal(
        k[2], (hidden_dim, hidden_dim), jnp.float32)
    w_out = (0.1 / math.sqrt(hidden_dim)) * jax.random.normal(
        k[3], (hidden_dim, output_dim), jnp.float32)
    bias = jnp.zeros((1, hidden_dim), jnp.float32)
    return fc_w, fc_b, w_in, w_rec, w_out, bias, k[4], k[5]


if __name__ == "__main__":
    key = jax.random.PRNGKey(0)
    configs = [
        # (init_dim, input_dim, hidden_dim, output_dim, alpha, T, N)
        (2, 1, 32, 2, 0.1, 8, 4),      # module defaults (small)
        (2, 3, 40, 2, 0.1, 20, 12),    # exercises padding + multi-dim input
    ]
    for cfg_i, (init_dim, input_dim, hidden_dim, output_dim,
                alpha, T, N) in enumerate(configs):
        key, sub = jax.random.split(key)
        (fc_w, fc_b, w_in, w_rec, w_out, bias,
         k_init, k_vel) = _make_params(sub, init_dim, input_dim,
                                       hidden_dim, output_dim)
        initdir = jax.random.normal(k_init, (1, N, init_dim), jnp.float32)
        velocities = jax.random.normal(k_vel, (T, N, input_dim), jnp.float32)

        out = ctrnn_forward(initdir, velocities, fc_w, fc_b, w_in, w_rec,
                            w_out, bias, alpha=alpha)
        out = jax.block_until_ready(out)

        ref = ctrnn_reference(initdir, velocities, fc_w, fc_b, w_in, w_rec,
                              w_out, bias, alpha=alpha)
        np.testing.assert_allclose(np.asarray(out), np.asarray(ref),
                                   rtol=1e-4, atol=2e-5)

    print("KERNEL_OK")
</pallas_src>

<mosaic_0001>
module attributes {stable_mosaic.version = 11 : i64} {
  func.func @_ctrnn_fused_kernel(%arg0: i32, %arg1: i32, %arg2: memref<8x128xf32, #tpu.memory_space<vmem>>, %arg3: memref<8x8x1xf32, #tpu.memory_space<vmem>>, %arg4: memref<1x128xf32, #tpu.memory_space<vmem>>, %arg5: memref<128x128xf32, #tpu.memory_space<vmem>>, %arg6: memref<128x128xf32, #tpu.memory_space<vmem>>, %arg7: memref<1x128xf32, #tpu.memory_space<vmem>>, %arg8: memref<8x8x2xf32, #tpu.memory_space<vmem>>, %arg9: memref<8x128xf32, #tpu.memory_space<vmem>>) attributes {dimension_semantics = [#tpu.dimension_semantics<parallel>, #tpu.dimension_semantics<arbitrary>], iteration_bounds = array<i64: 1, 1>, scalar_prefetch = 0 : i64, scratch_operands = 1 : i64, tpu.core_type = #tpu.core_type<tc>, window_params = [{transform_indices = @transform_0, window_bounds = array<i64: 8, 128>}, {transform_indices = @transform_1, window_bounds = array<i64: 8, 8, 1>}, {pipeline_mode = #tpu.pipeline_mode<synchronous>, transform_indices = @transform_2, window_bounds = array<i64: 1, 128>}, {pipeline_mode = #tpu.pipeline_mode<synchronous>, transform_indices = @transform_3, window_bounds = array<i64: 128, 128>}, {pipeline_mode = #tpu.pipeline_mode<synchronous>, transform_indices = @transform_4, window_bounds = array<i64: 128, 128>}, {pipeline_mode = #tpu.pipeline_mode<synchronous>, transform_indices = @transform_5, window_bounds = array<i64: 1, 128>}, {transform_indices = @transform_6, window_bounds = array<i64: 8, 8, 2>}]} {
    %c0_i32 = arith.constant 0 : i32
    %0 = arith.cmpi eq, %arg1, %c0_i32 : i32
    %1 = arith.extui %0 : i1 to i32
    %c0_i32_0 = arith.constant 0 : i32
    %2 = arith.cmpi ne, %1, %c0_i32_0 : i32
    scf.if %2 {
      %c0_92 = arith.constant 0 : index
      %c0_93 = arith.constant 0 : index
      %225 = vector.load %arg2[%c0_92, %c0_93] : memref<8x128xf32, #tpu.memory_space<vmem>>, vector<8x128xf32>
      %c0_94 = arith.constant 0 : index
      %c0_95 = arith.constant 0 : index
      %226 = vector.load %arg9[%c0_94, %c0_95] : memref<8x128xf32, #tpu.memory_space<vmem>>, vector<8x128xf32>
      tpu.vector_store %arg9[%c0_94, %c0_95], %225 {strides = array<i32>} : memref<8x128xf32, #tpu.memory_space<vmem>>, vector<8x128xf32>,
    } else {
    }
    %c0 = arith.constant 0 : index
    %c0_1 = arith.constant 0 : index
    %3 = vector.load %arg4[%c0, %c0_1] : memref<1x128xf32, #tpu.memory_space<vmem>>, vector<1x128xf32>
    %c0_2 = arith.constant 0 : index
    %c0_3 = arith.constant 0 : index
    %4 = vector.load %arg5[%c0_2, %c0_3] : memref<128x128xf32, #tpu.memory_space<vmem>>, vector<128x128xf32>
    %c0_4 = arith.constant 0 : index
    %c0_5 = arith.constant 0 : index
    %5 = vector.load %arg6[%c0_4, %c0_5] : memref<128x128xf32, #tpu.memory_space<vmem>>, vector<128x128xf32>
    %c0_6 = arith.constant 0 : index
    %c0_7 = arith.constant 0 : index
    %6 = vector.load %arg7[%c0_6, %c0_7] : memref<1x128xf32, #tpu.memory_space<vmem>>, vector<1x128xf32>
    %c0_8 = arith.constant 0 : index
    %c0_9 = arith.constant 0 : index
    %7 = vector.load %arg9[%c0_8, %c0_9] : memref<8x128xf32, #tpu.memory_space<vmem>>, vector<8x128xf32>
    %c0_i32_10 = arith.constant 0 : i32
    %8 = math.tanh %7 : vector<8x128xf32>
    %cst = arith.constant 0.000000e+00 : f32
    %9 = vector.broadcast %cst : f32 to vector<8x128xf32>
    %10 = arith.maximumf %8, %9 : vector<8x128xf32>
    %cst_11 = arith.constant dense<0.000000e+00> : vector<8x128xf32>
    %11 = tpu.matmul %10, %4, %cst_11 {dimension_numbers = #tpu.dot_dimension_numbers<[1], [0], [0], [1], [0, 0, 1, 1], [], []>} : vector<8x128xf32>, vector<128x128xf32>, vector<8x128xf32> -> vector<8x128xf32>
    %cst_12 = arith.constant 0.899999976 : f32
    %12 = vector.broadcast %cst_12 : f32 to vector<8x128xf32>
    %13 = arith.mulf %12, %7 : vector<8x128xf32>
    %14 = arith.index_cast %c0_i32_10 : i32 to index
    %c0_13 = arith.constant 0 : index
    %c0_14 = arith.constant 0 : index
    %15 = vector.load %arg3[%14, %c0_13, %c0_14] : memref<8x8x1xf32, #tpu.memory_space<vmem>>, vector<1x8x1xf32>
    %16 = vector.shape_cast %15 : vector<1x8x1xf32> to vector<8x1xf32>
    %17 = vector.broadcast %16 : vector<8x1xf32> to vector<8x128xf32>
    %18 = vector.broadcast %3 : vector<1x128xf32> to vector<8x128xf32>
    %19 = arith.mulf %17, %18 : vector<8x128xf32>
    %20 = arith.addf %11, %19 : vector<8x128xf32>
    %21 = vector.broadcast %6 : vector<1x128xf32> to vector<8x128xf32>
    %22 = arith.addf %20, %21 : vector<8x128xf32>
    %cst_15 = arith.constant 1.000000e-01 : f32
    %23 = vector.broadcast %cst_15 : f32 to vector<8x128xf32>
    %24 = arith.mulf %23, %22 : vector<8x128xf32>
    %25 = arith.addf %13, %24 : vector<8x128xf32>
    %26 = math.tanh %25 : vector<8x128xf32>
    %cst_16 = arith.constant 0.000000e+00 : f32
    %27 = vector.broadcast %cst_16 : f32 to vector<8x128xf32>
    %28 = arith.maximumf %26, %27 : vector<8x128xf32>
    %cst_17 = arith.constant dense<0.000000e+00> : vector<8x128xf32>
    %29 = tpu.matmul %28, %5, %cst_17 {dimension_numbers = #tpu.dot_dimension_numbers<[1], [0], [0], [1], [0, 0, 1, 1], [], []>} : vector<8x128xf32>, vector<128x128xf32>, vector<8x128xf32> -> vector<8x128xf32>
    %30 = vector.extract_strided_slice %29 {offsets = [0, 0], sizes = [8, 2], strides = [1, 1]} : vector<8x128xf32> to vector<8x2xf32>
    %31 = arith.index_cast %c0_i32_10 : i32 to index
    %c0_18 = arith.constant 0 : index
    %c0_19 = arith.constant 0 : index
    %32 = vector.load %arg8[%31, %c0_18, %c0_19] : memref<8x8x2xf32, #tpu.memory_space<vmem>>, vector<1x8x2xf32>
    %33 = vector.shape_cast %32 : vector<1x8x2xf32> to vector<8x2xf32>
    %34 = vector.shape_cast %30 : vector<8x2xf32> to vector<1x8x2xf32>
    tpu.vector_store %arg8[%31, %c0_18, %c0_19], %34 {strides = array<i32>} : memref<8x8x2xf32, #tpu.memory_space<vmem>>, vector<1x8x2xf32>,
    %c1_i32 = arith.constant 1 : i32
    %35 = math.tanh %25 : vector<8x128xf32>
    %cst_20 = arith.constant 0.000000e+00 : f32
    %36 = vector.broadcast %cst_20 : f32 to vector<8x128xf32>
    %37 = arith.maximumf %35, %36 : vector<8x128xf32>
    %cst_21 = arith.constant dense<0.000000e+00> : vector<8x128xf32>
    %38 = tpu.matmul %37, %4, %cst_21 {dimension_numbers = #tpu.dot_dimension_numbers<[1], [0], [0], [1], [0, 0, 1, 1], [], []>} : vector<8x128xf32>, vector<128x128xf32>, vector<8x128xf32> -> vector<8x128xf32>
    %cst_22 = arith.constant 0.899999976 : f32
    %39 = vector.broadcast %cst_22 : f32 to vector<8x128xf32>
    %40 = arith.mulf %39, %25 : vector<8x128xf32>
    %41 = arith.index_cast %c1_i32 : i32 to index
    %c0_23 = arith.constant 0 : index
    %c0_24 = arith.constant 0 : index
    %42 = vector.load %arg3[%41, %c0_23, %c0_24] : memref<8x8x1xf32, #tpu.memory_space<vmem>>, vector<1x8x1xf32>
    %43 = vector.shape_cast %42 : vector<1x8x1xf32> to vector<8x1xf32>
    %44 = vector.broadcast %43 : vector<8x1xf32> to vector<8x128xf32>
    %45 = vector.broadcast %3 : vector<1x128xf32> to vector<8x128xf32>
    %46 = arith.mulf %44, %45 : vector<8x128xf32>
    %47 = arith.addf %38, %46 : vector<8x128xf32>
    %48 = vector.broadcast %6 : vector<1x128xf32> to vector<8x128xf32>
    %49 = arith.addf %47, %48 : vector<8x128xf32>
    %cst_25 = arith.constant 1.000000e-01 : f32
    %50 = vector.broadcast %cst_25 : f32 to vector<8x128xf32>
    %51 = arith.mulf %50, %49 : vector<8x128xf32>
    %52 = arith.addf %40, %51 : vector<8x128xf32>
    %53 = math.tanh %52 : vector<8x128xf32>
    %cst_26 = arith.constant 0.000000e+00 : f32
    %54 = vector.broadcast %cst_26 : f32 to vector<8x128xf32>
    %55 = arith.maximumf %53, %54 : vector<8x128xf32>
    %cst_27 = arith.constant dense<0.000000e+00> : vector<8x128xf32>
    %56 = tpu.matmul %55, %5, %cst_27 {dimension_numbers = #tpu.dot_dimension_numbers<[1], [0], [0], [1], [0, 0, 1, 1], [], []>} : vector<8x128xf32>, vector<128x128xf32>, vector<8x128xf32> -> vector<8x128xf32>
    %57 = vector.extract_strided_slice %56 {offsets = [0, 0], sizes = [8, 2], strides = [1, 1]} : vector<8x128xf32> to vector<8x2xf32>
    %58 = arith.index_cast %c1_i32 : i32 to index
    %c0_28 = arith.constant 0 : index
    %c0_29 = arith.constant 0 : index
    %59 = vector.load %arg8[%58, %c0_28, %c0_29] : memref<8x8x2xf32, #tpu.memory_space<vmem>>, vector<1x8x2xf32>
    %60 = vector.shape_cast %59 : vector<1x8x2xf32> to vector<8x2xf32>
    %61 = vector.shape_cast %57 : vector<8x2xf32> to vector<1x8x2xf32>
    tpu.vector_store %arg8[%58, %c0_28, %c0_29], %61 {strides = array<i32>} : memref<8x8x2xf32, #tpu.memory_space<vmem>>, vector<1x8x2xf32>,
    %c2_i32 = arith.constant 2 : i32
    %62 = math.tanh %52 : vector<8x128xf32>
    %cst_30 = arith.constant 0.000000e+00 : f32
    %63 = vector.broadcast %cst_30 : f32 to vector<8x128xf32>
    %64 = arith.maximumf %62, %63 : vector<8x128xf32>
    %cst_31 = arith.constant dense<0.000000e+00> : vector<8x128xf32>
    %65 = tpu.matmul %64, %4, %cst_31 {dimension_numbers = #tpu.dot_dimension_numbers<[1], [0], [0], [1], [0, 0, 1, 1], [], []>} : vector<8x128xf32>, vector<128x128xf32>, vector<8x128xf32> -> vector<8x128xf32>
    %cst_32 = arith.constant 0.899999976 : f32
    %66 = vector.broadcast %cst_32 : f32 to vector<8x128xf32>
    %67 = arith.mulf %66, %52 : vector<8x128xf32>
    %68 = arith.index_cast %c2_i32 : i32 to index
    %c0_33 = arith.constant 0 : index
    %c0_34 = arith.constant 0 : index
    %69 = vector.load %arg3[%68, %c0_33, %c0_34] : memref<8x8x1xf32, #tpu.memory_space<vmem>>, vector<1x8x1xf32>
    %70 = vector.shape_cast %69 : vector<1x8x1xf32> to vector<8x1xf32>
    %71 = vector.broadcast %70 : vector<8x1xf32> to vector<8x128xf32>
    %72 = vector.broadcast %3 : vector<1x128xf32> to vector<8x128xf32>
    %73 = arith.mulf %71, %72 : vector<8x128xf32>
    %74 = arith.addf %65, %73 : vector<8x128xf32>
    %75 = vector.broadcast %6 : vector<1x128xf32> to vector<8x128xf32>
    %76 = arith.addf %74, %75 : vector<8x128xf32>
    %cst_35 = arith.constant 1.000000e-01 : f32
    %77 = vector.broadcast %cst_35 : f32 to vector<8x128xf32>
    %78 = arith.mulf %77, %76 : vector<8x128xf32>
    %79 = arith.addf %67, %78 : vector<8x128xf32>
    %80 = math.tanh %79 : vector<8x128xf32>
    %cst_36 = arith.constant 0.000000e+00 : f32
    %81 = vector.broadcast %cst_36 : f32 to vector<8x128xf32>
    %82 = arith.maximumf %80, %81 : vector<8x128xf32>
    %cst_37 = arith.constant dense<0.000000e+00> : vector<8x128xf32>
    %83 = tpu.matmul %82, %5, %cst_37 {dimension_numbers = #tpu.dot_dimension_numbers<[1], [0], [0], [1], [0, 0, 1, 1], [], []>} : vector<8x128xf32>, vector<128x128xf32>, vector<8x128xf32> -> vector<8x128xf32>
    %84 = vector.extract_strided_slice %83 {offsets = [0, 0], sizes = [8, 2], strides = [1, 1]} : vector<8x128xf32> to vector<8x2xf32>
    %85 = arith.index_cast %c2_i32 : i32 to index
    %c0_38 = arith.constant 0 : index
    %c0_39 = arith.constant 0 : index
    %86 = vector.load %arg8[%85, %c0_38, %c0_39] : memref<8x8x2xf32, #tpu.memory_space<vmem>>, vector<1x8x2xf32>
    %87 = vector.shape_cast %86 : vector<1x8x2xf32> to vector<8x2xf32>
    %88 = vector.shape_cast %84 : vector<8x2xf32> to vector<1x8x2xf32>
    tpu.vector_store %arg8[%85, %c0_38, %c0_39], %88 {strides = array<i32>} : memref<8x8x2xf32, #tpu.memory_space<vmem>>, vector<1x8x2xf32>,
    %c3_i32 = arith.constant 3 : i32
    %89 = math.tanh %79 : vector<8x128xf32>
    %cst_40 = arith.constant 0.000000e+00 : f32
    %90 = vector.broadcast %cst_40 : f32 to vector<8x128xf32>
    %91 = arith.maximumf %89, %90 : vector<8x128xf32>
    %cst_41 = arith.constant dense<0.000000e+00> : vector<8x128xf32>
    %92 = tpu.matmul %91, %4, %cst_41 {dimension_numbers = #tpu.dot_dimension_numbers<[1], [0], [0], [1], [0, 0, 1, 1], [], []>} : vector<8x128xf32>, vector<128x128xf32>, vector<8x128xf32> -> vector<8x128xf32>
    %cst_42 = arith.constant 0.899999976 : f32
    %93 = vector.broadcast %cst_42 : f32 to vector<8x128xf32>
    %94 = arith.mulf %93, %79 : vector<8x128xf32>
    %95 = arith.index_cast %c3_i32 : i32 to index
    %c0_43 = arith.constant 0 : index
    %c0_44 = arith.constant 0 : index
    %96 = vector.load %arg3[%95, %c0_43, %c0_44] : memref<8x8x1xf32, #tpu.memory_space<vmem>>, vector<1x8x1xf32>
    %97 = vector.shape_cast %96 : vector<1x8x1xf32> to vector<8x1xf32>
    %98 = vector.broadcast %97 : vector<8x1xf32> to vector<8x128xf32>
    %99 = vector.broadcast %3 : vector<1x128xf32> to vector<8x128xf32>
    %100 = arith.mulf %98, %99 : vector<8x128xf32>
    %101 = arith.addf %92, %100 : vector<8x128xf32>
    %102 = vector.broadcast %6 : vector<1x128xf32> to vector<8x128xf32>
    %103 = arith.addf %101, %102 : vector<8x128xf32>
    %cst_45 = arith.constant 1.000000e-01 : f32
    %104 = vector.broadcast %cst_45 : f32 to vector<8x128xf32>
    %105 = arith.mulf %104, %103 : vector<8x128xf32>
    %106 = arith.addf %94, %105 : vector<8x128xf32>
    %107 = math.tanh %106 : vector<8x128xf32>
    %cst_46 = arith.constant 0.000000e+00 : f32
    %108 = vector.broadcast %cst_46 : f32 to vector<8x128xf32>
    %109 = arith.maximumf %107, %108 : vector<8x128xf32>
    %cst_47 = arith.constant dense<0.000000e+00> : vector<8x128xf32>
    %110 = tpu.matmul %109, %5, %cst_47 {dimension_numbers = #tpu.dot_dimension_numbers<[1], [0], [0], [1], [0, 0, 1, 1], [], []>} : vector<8x128xf32>, vector<128x128xf32>, vector<8x128xf32> -> vector<8x128xf32>
    %111 = vector.extract_strided_slice %110 {offsets = [0, 0], sizes = [8, 2], strides = [1, 1]} : vector<8x128xf32> to vector<8x2xf32>
    %112 = arith.index_cast %c3_i32 : i32 to index
    %c0_48 = arith.constant 0 : index
    %c0_49 = arith.constant 0 : index
    %113 = vector.load %arg8[%112, %c0_48, %c0_49] : memref<8x8x2xf32, #tpu.memory_space<vmem>>, vector<1x8x2xf32>
    %114 = vector.shape_cast %113 : vector<1x8x2xf32> to vector<8x2xf32>
    %115 = vector.shape_cast %111 : vector<8x2xf32> to vector<1x8x2xf32>
    tpu.vector_store %arg8[%112, %c0_48, %c0_49], %115 {strides = array<i32>} : memref<8x8x2xf32, #tpu.memory_space<vmem>>, vector<1x8x2xf32>,
    %c4_i32 = arith.constant 4 : i32
    %116 = math.tanh %106 : vector<8x128xf32>
    %cst_50 = arith.constant 0.000000e+00 : f32
    %117 = vector.broadcast %cst_50 : f32 to vector<8x128xf32>
    %118 = arith.maximumf %116, %117 : vector<8x128xf32>
    %cst_51 = arith.constant dense<0.000000e+00> : vector<8x128xf32>
    %119 = tpu.matmul %118, %4, %cst_51 {dimension_numbers = #tpu.dot_dimension_numbers<[1], [0], [0], [1], [0, 0, 1, 1], [], []>} : vector<8x128xf32>, vector<128x128xf32>, vector<8x128xf32> -> vector<8x128xf32>
    %cst_52 = arith.constant 0.899999976 : f32
    %120 = vector.broadcast %cst_52 : f32 to vector<8x128xf32>
    %121 = arith.mulf %120, %106 : vector<8x128xf32>
    %122 = arith.index_cast %c4_i32 : i32 to index
    %c0_53 = arith.constant 0 : index
    %c0_54 = arith.constant 0 : index
    %123 = vector.load %arg3[%122, %c0_53, %c0_54] : memref<8x8x1xf32, #tpu.memory_space<vmem>>, vector<1x8x1xf32>
    %124 = vector.shape_cast %123 : vector<1x8x1xf32> to vector<8x1xf32>
    %125 = vector.broadcast %124 : vector<8x1xf32> to vector<8x128xf32>
    %126 = vector.broadcast %3 : vector<1x128xf32> to vector<8x128xf32>
    %127 = arith.mulf %125, %126 : vector<8x128xf32>
    %128 = arith.addf %119, %127 : vector<8x128xf32>
    %129 = vector.broadcast %6 : vector<1x128xf32> to vector<8x128xf32>
    %130 = arith.addf %128, %129 : vector<8x128xf32>
    %cst_55 = arith.constant 1.000000e-01 : f32
    %131 = vector.broadcast %cst_55 : f32 to vector<8x128xf32>
    %132 = arith.mulf %131, %130 : vector<8x128xf32>
    %133 = arith.addf %121, %132 : vector<8x128xf32>
    %134 = math.tanh %133 : vector<8x128xf32>
    %cst_56 = arith.constant 0.000000e+00 : f32
    %135 = vector.broadcast %cst_56 : f32 to vector<8x128xf32>
    %136 = arith.maximumf %134, %135 : vector<8x128xf32>
    %cst_57 = arith.constant dense<0.000000e+00> : vector<8x128xf32>
    %137 = tpu.matmul %136, %5, %cst_57 {dimension_numbers = #tpu.dot_dimension_numbers<[1], [0], [0], [1], [0, 0, 1, 1], [], []>} : vector<8x128xf32>, vector<128x128xf32>, vector<8x128xf32> -> vector<8x128xf32>
    %138 = vector.extract_strided_slice %137 {offsets = [0, 0], sizes = [8, 2], strides = [1, 1]} : vector<8x128xf32> to vector<8x2xf32>
    %139 = arith.index_cast %c4_i32 : i32 to index
    %c0_58 = arith.constant 0 : index
    %c0_59 = arith.constant 0 : index
    %140 = vector.load %arg8[%139, %c0_58, %c0_59] : memref<8x8x2xf32, #tpu.memory_space<vmem>>, vector<1x8x2xf32>
    %141 = vector.shape_cast %140 : vector<1x8x2xf32> to vector<8x2xf32>
    %142 = vector.shape_cast %138 : vector<8x2xf32> to vector<1x8x2xf32>
    tpu.vector_store %arg8[%139, %c0_58, %c0_59], %142 {strides = array<i32>} : memref<8x8x2xf32, #tpu.memory_space<vmem>>, vector<1x8x2xf32>,
    %c5_i32 = arith.constant 5 : i32
    %143 = math.tanh %133 : vector<8x128xf32>
    %cst_60 = arith.constant 0.000000e+00 : f32
    %144 = vector.broadcast %cst_60 : f32 to vector<8x128xf32>
    %145 = arith.maximumf %143, %144 : vector<8x128xf32>
    %cst_61 = arith.constant dense<0.000000e+00> : vector<8x128xf32>
    %146 = tpu.matmul %145, %4, %cst_61 {dimension_numbers = #tpu.dot_dimension_numbers<[1], [0], [0], [1], [0, 0, 1, 1], [], []>} : vector<8x128xf32>, vector<128x128xf32>, vector<8x128xf32> -> vector<8x128xf32>
    %cst_62 = arith.constant 0.899999976 : f32
    %147 = vector.broadcast %cst_62 : f32 to vector<8x128xf32>
    %148 = arith.mulf %147, %133 : vector<8x128xf32>
    %149 = arith.index_cast %c5_i32 : i32 to index
    %c0_63 = arith.constant 0 : index
    %c0_64 = arith.constant 0 : index
    %150 = vector.load %arg3[%149, %c0_63, %c0_64] : memref<8x8x1xf32, #tpu.memory_space<vmem>>, vector<1x8x1xf32>
    %151 = vector.shape_cast %150 : vector<1x8x1xf32> to vector<8x1xf32>
    %152 = vector.broadcast %151 : vector<8x1xf32> to vector<8x128xf32>
    %153 = vector.broadcast %3 : vector<1x128xf32> to vector<8x128xf32>
    %154 = arith.mulf %152, %153 : vector<8x128xf32>
    %155 = arith.addf %146, %154 : vector<8x128xf32>
    %156 = vector.broadcast %6 : vector<1x128xf32> to vector<8x128xf32>
    %157 = arith.addf %155, %156 : vector<8x128xf32>
    %cst_65 = arith.constant 1.000000e-01 : f32
    %158 = vector.broadcast %cst_65 : f32 to vector<8x128xf32>
    %159 = arith.mulf %158, %157 : vector<8x128xf32>
    %160 = arith.addf %148, %159 : vector<8x128xf32>
    %161 = math.tanh %160 : vector<8x128xf32>
    %cst_66 = arith.constant 0.000000e+00 : f32
    %162 = vector.broadcast %cst_66 : f32 to vector<8x128xf32>
    %163 = arith.maximumf %161, %162 : vector<8x128xf32>
    %cst_67 = arith.constant dense<0.000000e+00> : vector<8x128xf32>
    %164 = tpu.matmul %163, %5, %cst_67 {dimension_numbers = #tpu.dot_dimension_numbers<[1], [0], [0], [1], [0, 0, 1, 1], [], []>} : vector<8x128xf32>, vector<128x128xf32>, vector<8x128xf32> -> vector<8x128xf32>
    %165 = vector.extract_strided_slice %164 {offsets = [0, 0], sizes = [8, 2], strides = [1, 1]} : vector<8x128xf32> to vector<8x2xf32>
    %166 = arith.index_cast %c5_i32 : i32 to index
    %c0_68 = arith.constant 0 : index
    %c0_69 = arith.constant 0 : index
    %167 = vector.load %arg8[%166, %c0_68, %c0_69] : memref<8x8x2xf32, #tpu.memory_space<vmem>>, vector<1x8x2xf32>
    %168 = vector.shape_cast %167 : vector<1x8x2xf32> to vector<8x2xf32>
    %169 = vector.shape_cast %165 : vector<8x2xf32> to vector<1x8x2xf32>
    tpu.vector_store %arg8[%166, %c0_68, %c0_69], %169 {strides = array<i32>} : memref<8x8x2xf32, #tpu.memory_space<vmem>>, vector<1x8x2xf32>,
    %c6_i32 = arith.constant 6 : i32
    %170 = math.tanh %160 : vector<8x128xf32>
    %cst_70 = arith.constant 0.000000e+00 : f32
    %171 = vector.broadcast %cst_70 : f32 to vector<8x128xf32>
    %172 = arith.maximumf %170, %171 : vector<8x128xf32>
    %cst_71 = arith.constant dense<0.000000e+00> : vector<8x128xf32>
    %173 = tpu.matmul %172, %4, %cst_71 {dimension_numbers = #tpu.dot_dimension_numbers<[1], [0], [0], [1], [0, 0, 1, 1], [], []>} : vector<8x128xf32>, vector<128x128xf32>, vector<8x128xf32> -> vector<8x128xf32>
    %cst_72 = arith.constant 0.899999976 : f32
    %174 = vector.broadcast %cst_72 : f32 to vector<8x128xf32>
    %175 = arith.mulf %174, %160 : vector<8x128xf32>
    %176 = arith.index_cast %c6_i32 : i32 to index
    %c0_73 = arith.constant 0 : index
    %c0_74 = arith.constant 0 : index
    %177 = vector.load %arg3[%176, %c0_73, %c0_74] : memref<8x8x1xf32, #tpu.memory_space<vmem>>, vector<1x8x1xf32>
    %178 = vector.shape_cast %177 : vector<1x8x1xf32> to vector<8x1xf32>
    %179 = vector.broadcast %178 : vector<8x1xf32> to vector<8x128xf32>
    %180 = vector.broadcast %3 : vector<1x128xf32> to vector<8x128xf32>
    %181 = arith.mulf %179, %180 : vector<8x128xf32>
    %182 = arith.addf %173, %181 : vector<8x128xf32>
    %183 = vector.broadcast %6 : vector<1x128xf32> to vector<8x128xf32>
    %184 = arith.addf %182, %183 : vector<8x128xf32>
    %cst_75 = arith.constant 1.000000e-01 : f32
    %185 = vector.broadcast %cst_75 : f32 to vector<8x128xf32>
    %186 = arith.mulf %185, %184 : vector<8x128xf32>
    %187 = arith.addf %175, %186 : vector<8x128xf32>
    %188 = math.tanh %187 : vector<8x128xf32>
    %cst_76 = arith.constant 0.000000e+00 : f32
    %189 = vector.broadcast %cst_76 : f32 to vector<8x128xf32>
    %190 = arith.maximumf %188, %189 : vector<8x128xf32>
    %cst_77 = arith.constant dense<0.000000e+00> : vector<8x128xf32>
    %191 = tpu.matmul %190, %5, %cst_77 {dimension_numbers = #tpu.dot_dimension_numbers<[1], [0], [0], [1], [0, 0, 1, 1], [], []>} : vector<8x128xf32>, vector<128x128xf32>, vector<8x128xf32> -> vector<8x128xf32>
    %192 = vector.extract_strided_slice %191 {offsets = [0, 0], sizes = [8, 2], strides = [1, 1]} : vector<8x128xf32> to vector<8x2xf32>
    %193 = arith.index_cast %c6_i32 : i32 to index
    %c0_78 = arith.constant 0 : index
    %c0_79 = arith.constant 0 : index
    %194 = vector.load %arg8[%193, %c0_78, %c0_79] : memref<8x8x2xf32, #tpu.memory_space<vmem>>, vector<1x8x2xf32>
    %195 = vector.shape_cast %194 : vector<1x8x2xf32> to vector<8x2xf32>
    %196 = vector.shape_cast %192 : vector<8x2xf32> to vector<1x8x2xf32>
    tpu.vector_store %arg8[%193, %c0_78, %c0_79], %196 {strides = array<i32>} : memref<8x8x2xf32, #tpu.memory_space<vmem>>, vector<1x8x2xf32>,
    %c7_i32 = arith.constant 7 : i32
    %197 = math.tanh %187 : vector<8x128xf32>
    %cst_80 = arith.constant 0.000000e+00 : f32
    %198 = vector.broadcast %cst_80 : f32 to vector<8x128xf32>
    %199 = arith.maximumf %197, %198 : vector<8x128xf32>
    %cst_81 = arith.constant dense<0.000000e+00> : vector<8x128xf32>
    %200 = tpu.matmul %199, %4, %cst_81 {dimension_numbers = #tpu.dot_dimension_numbers<[1], [0], [0], [1], [0, 0, 1, 1], [], []>} : vector<8x128xf32>, vector<128x128xf32>, vector<8x128xf32> -> vector<8x128xf32>
    %cst_82 = arith.constant 0.899999976 : f32
    %201 = vector.broadcast %cst_82 : f32 to vector<8x128xf32>
    %202 = arith.mulf %201, %187 : vector<8x128xf32>
    %203 = arith.index_cast %c7_i32 : i32 to index
    %c0_83 = arith.constant 0 : index
    %c0_84 = arith.constant 0 : index
    %204 = vector.load %arg3[%203, %c0_83, %c0_84] : memref<8x8x1xf32, #tpu.memory_space<vmem>>, vector<1x8x1xf32>
    %205 = vector.shape_cast %204 : vector<1x8x1xf32> to vector<8x1xf32>
    %206 = vector.broadcast %205 : vector<8x1xf32> to vector<8x128xf32>
    %207 = vector.broadcast %3 : vector<1x128xf32> to vector<8x128xf32>
    %208 = arith.mulf %206, %207 : vector<8x128xf32>
    %209 = arith.addf %200, %208 : vector<8x128xf32>
    %210 = vector.broadcast %6 : vector<1x128xf32> to vector<8x128xf32>
    %211 = arith.addf %209, %210 : vector<8x128xf32>
    %cst_85 = arith.constant 1.000000e-01 : f32
    %212 = vector.broadcast %cst_85 : f32 to vector<8x128xf32>
    %213 = arith.mulf %212, %211 : vector<8x128xf32>
    %214 = arith.addf %202, %213 : vector<8x128xf32>
    %215 = math.tanh %214 : vector<8x128xf32>
    %cst_86 = arith.constant 0.000000e+00 : f32
    %216 = vector.broadcast %cst_86 : f32 to vector<8x128xf32>
    %217 = arith.maximumf %215, %216 : vector<8x128xf32>
    %cst_87 = arith.constant dense<0.000000e+00> : vector<8x128xf32>
    %218 = tpu.matmul %217, %5, %cst_87 {dimension_numbers = #tpu.dot_dimension_numbers<[1], [0], [0], [1], [0, 0, 1, 1], [], []>} : vector<8x128xf32>, vector<128x128xf32>, vector<8x128xf32> -> vector<8x128xf32>
    %219 = vector.extract_strided_slice %218 {offsets = [0, 0], sizes = [8, 2], strides = [1, 1]} : vector<8x128xf32> to vector<8x2xf32>
    %220 = arith.index_cast %c7_i32 : i32 to index
    %c0_88 = arith.constant 0 : index
    %c0_89 = arith.constant 0 : index
    %221 = vector.load %arg8[%220, %c0_88, %c0_89] : memref<8x8x2xf32, #tpu.memory_space<vmem>>, vector<1x8x2xf32>
    %222 = vector.shape_cast %221 : vector<1x8x2xf32> to vector<8x2xf32>
    %223 = vector.shape_cast %219 : vector<8x2xf32> to vector<1x8x2xf32>
    tpu.vector_store %arg8[%220, %c0_88, %c0_89], %223 {strides = array<i32>} : memref<8x8x2xf32, #tpu.memory_space<vmem>>, vector<1x8x2xf32>,
    %c8_i32 = arith.constant 8 : i32
    %c0_90 = arith.constant 0 : index
    %c0_91 = arith.constant 0 : index
    %224 = vector.load %arg9[%c0_90, %c0_91] : memref<8x128xf32, #tpu.memory_space<vmem>>, vector<8x128xf32>
    tpu.vector_store %arg9[%c0_90, %c0_91], %214 {strides = array<i32>} : memref<8x128xf32, #tpu.memory_space<vmem>>, vector<8x128xf32>,
    return
  }
  func.func @transform_0(%arg0: i32, %arg1: i32) -> (i32, i32) {
    %c0_i32 = arith.constant 0 : i32
    %c0_i32_0 = arith.constant 0 : i32
    return %arg0, %c0_i32 : i32, i32
  }
  func.func @transform_1(%arg0: i32, %arg1: i32) -> (i32, i32, i32) {
    %c0_i32 = arith.constant 0 : i32
    %c0_i32_0 = arith.constant 0 : i32
    return %arg1, %arg0, %c0_i32 : i32, i32, i32
  }
  func.func @transform_2(%arg0: i32, %arg1: i32) -> (i32, i32) {
    %c0_i32 = arith.constant 0 : i32
    %c0_i32_0 = arith.constant 0 : i32
    %c0_i32_1 = arith.constant 0 : i32
    return %c0_i32, %c0_i32_0 : i32, i32
  }
  func.func @transform_3(%arg0: i32, %arg1: i32) -> (i32, i32) {
    %c0_i32 = arith.constant 0 : i32
    %c0_i32_0 = arith.constant 0 : i32
    %c0_i32_1 = arith.constant 0 : i32
    return %c0_i32, %c0_i32_0 : i32, i32
  }
  func.func @transform_4(%arg0: i32, %arg1: i32) -> (i32, i32) {
    %c0_i32 = arith.constant 0 : i32
    %c0_i32_0 = arith.constant 0 : i32
    %c0_i32_1 = arith.constant 0 : i32
    return %c0_i32, %c0_i32_0 : i32, i32
  }
  func.func @transform_5(%arg0: i32, %arg1: i32) -> (i32, i32) {
    %c0_i32 = arith.constant 0 : i32
    %c0_i32_0 = arith.constant 0 : i32
    %c0_i32_1 = arith.constant 0 : i32
    return %c0_i32, %c0_i32_0 : i32, i32
  }
  func.func @transform_6(%arg0: i32, %arg1: i32) -> (i32, i32, i32) {
    %c0_i32 = arith.constant 0 : i32
    %c0_i32_0 = arith.constant 0 : i32
    return %arg1, %arg0, %c0_i32 : i32, i32, i32
  }
}

</mosaic_0001>

<llo_original>
// kernel: tpu_custom_call.1
$region0: #{tpu_custom_call.1}
  #allocation0 [shape = 'u32[]', space=smem, size = 0x4, offset = 0x4, fixed_abs, tag = 'smem constant byte address 0x4 - core index']
  #allocation1 [shape = 'u32[144,128]{1,0:T(1,128)}', space=vmem, size = 0x12000, scoped, tag = 'internal scratch']
  #allocation2 [shape = 'f32[8,128]{1,0:T(8,128)}', space=vmem, size = 0x1000, scoped, tag = 'scratch operand']
  %s0 = inlined_call_operand.vmem [shape: f32[8,128], index: 0, kind: input, shape index: {}]
  %s1 = inlined_call_operand.vmem [shape: f32[8,8,1], index: 1, kind: input, shape index: {}]
  %s2 = inlined_call_operand.vmem [shape: f32[1,128], index: 2, kind: input, shape index: {}]
  %s3 = inlined_call_operand.hbm [shape: f32[128,128], index: 3, kind: input, shape index: {}]
  %s4 = inlined_call_operand.hbm [shape: f32[128,128], index: 4, kind: input, shape index: {}]
  %s5 = inlined_call_operand.vmem [shape: f32[1,128], index: 5, kind: input, shape index: {}]
  %s6 = inlined_call_operand.vmem [shape: f32[8,8,2], index: 6, kind: output, shape index: {}]
  %s7 = sld [smem:[#allocation0]]
  $region46: #{tpu_custom_call.1} parent=0
    _
  %s9 = ssub.s32 1, %s7
  %s10 = scalar_select 0, %s9, %s7
  $region1: #{tpu_custom_call.1} parent=0
    #allocation3 [shape = 'u8[65536]{0}', space=vmem, size = 0x10000, scoped, tag = 'input window, operand 3, single buffered']
    #allocation4 [shape = 's32[1]{0}', space=sflag, size = 0x4, scoped, tag = 'scoped memory for tpu_custom_call.1']
    #allocation5 [shape = 'u8[65536]{0}', space=vmem, size = 0x10000, scoped, tag = 'input window, operand 4, single buffered']
    #allocation6 [shape = 's32[1]{0}', space=sflag, size = 0x4, scoped, tag = 'scoped memory for tpu_custom_call.1']
    %11 = vsyncpa [#allocation4], 0
    %12 = vsyncpa [#allocation6], 0
    // Predicated region
    $region2: #{tpu_custom_call.1} parent=1 // pred_check
      _
    $region3: #{tpu_custom_call.1} parent=1 // pred_check_branch
      %14 = sbr.rel (0) target = $region5
    $region4: #{tpu_custom_call.1} parent=1 // pred_region
      _
    $region5: #{tpu_custom_call.1} parent=1 // pred_fallthru
      _
    // Predicated region
    $region6: #{tpu_custom_call.1} parent=1 // pred_check
      _
    $region7: #{tpu_custom_call.1} parent=1 // pred_check_branch
      %16 = sbr.rel (0) target = $region9
    $region8: #{tpu_custom_call.1} parent=1 // pred_region
      _
    $region9: #{tpu_custom_call.1} parent=1 // pred_fallthru
      _
    // Predicated region
    $region10: #{tpu_custom_call.1} parent=1 // pred_check
      _
    $region11: #{tpu_custom_call.1} parent=1 // pred_check_branch
      %18 = sbr.rel (0) target = $region13
    $region12: #{tpu_custom_call.1} parent=1 // pred_region
      _
    $region13: #{tpu_custom_call.1} parent=1 // pred_fallthru
      _
    // Predicated region
    $region14: #{tpu_custom_call.1} parent=1 // pred_check
      _
    $region15: #{tpu_custom_call.1} parent=1 // pred_check_branch
      %20 = sbr.rel (0) target = $region17
    $region16: #{tpu_custom_call.1} parent=1 // pred_region
      %s22 = ssub.s32 2048, 2048
      %23 = vsyncadd [#allocation4], %s22
      %s24 = sshll.u32 [#allocation3], 4
      %s25 = int_to_ptr.vmem [resolvable:$true] %s24
      %30 = dma.hbm_to_vmem [thread:$0]  %s3, 2048, %s25, [#allocation4], 128, 128, 8
    $region17: #{tpu_custom_call.1} parent=1 // pred_fallthru
      _
    // Predicated region
    $region18: #{tpu_custom_call.1} parent=1 // pred_check
      _
    $region19: #{tpu_custom_call.1} parent=1 // pred_check_branch
      %32 = sbr.rel (0) target = $region21
    $region20: #{tpu_custom_call.1} parent=1 // pred_region
      %s34 = ssub.s32 2048, 2048
      %35 = vsyncadd [#allocation6], %s34
      %s36 = sshll.u32 [#allocation5], 4
      %s37 = int_to_ptr.vmem [resolvable:$true] %s36
      %42 = dma.hbm_to_vmem [thread:$0]  %s4, 2048, %s37, [#allocation6], 128, 128, 8
    $region21: #{tpu_custom_call.1} parent=1 // pred_fallthru
      _
    // Predicated region
    $region22: #{tpu_custom_call.1} parent=1 // pred_check
      _
    $region23: #{tpu_custom_call.1} parent=1 // pred_check_branch
      %44 = sbr.rel (0) target = $region25
    $region24: #{tpu_custom_call.1} parent=1 // pred_region
      _
    $region25: #{tpu_custom_call.1} parent=1 // pred_fallthru
      _
    // Predicated region
    $region26: #{tpu_custom_call.1} parent=1 // pred_check
      _
    $region27: #{tpu_custom_call.1} parent=1 // pred_check_branch
      %46 = sbr.rel (0) target = $region29
    $region28: #{tpu_custom_call.1} parent=1 // pred_region
      %47 = dma.done [#allocation4], 2048
    $region29: #{tpu_custom_call.1} parent=1 // pred_fallthru
      _
    // Predicated region
    $region30: #{tpu_custom_call.1} parent=1 // pred_check
      _
    $region31: #{tpu_custom_call.1} parent=1 // pred_check_branch
      %49 = sbr.rel (0) target = $region33
    $region32: #{tpu_custom_call.1} parent=1 // pred_region
      %50 = dma.done [#allocation6], 2048
    $region33: #{tpu_custom_call.1} parent=1 // pred_fallthru
      _
    %p51 = scmp.eq.s32.totalorder 0, 0
    // Predicated region
    $region34: #{tpu_custom_call.1} parent=1 // pred_check
      %p52 = pneg %p51
    $region35: #{tpu_custom_call.1} parent=1 // pred_check_branch
      %54 = sbr.rel (%p52) target = $region37
    $region36: #{tpu_custom_call.1} parent=1 // pred_region
      %v55 = vld [vmem:[%s0] sm:$0xff]
      %56 = vst [vmem:[#allocation2] sm:$0xff] %v55
    $region37: #{tpu_custom_call.1} parent=1 // pred_fallthru
      _
    %v57 = vld [vmem:[%s2] sm:$0x1]
    %v58 = vld [vmem:[#allocation3] sm:$0xff]
    %v59 = vld [vmem:[#allocation3 + $0x8] sm:$0xff]
    %v60 = vld [vmem:[#allocation3 + $0x10] sm:$0xff]
    %v61 = vld [vmem:[#allocation3 + $0x18] sm:$0xff]
    %v62 = vld [vmem:[#allocation3 + $0x20] sm:$0xff]
    %v63 = vld [vmem:[#allocation3 + $0x28] sm:$0xff]
    %v64 = vld [vmem:[#allocation3 + $0x30] sm:$0xff]
    %v65 = vld [vmem:[#allocation3 + $0x38] sm:$0xff]
    %v66 = vld [vmem:[#allocation3 + $0x40] sm:$0xff]
    %v67 = vld [vmem:[#allocation3 + $0x48] sm:$0xff]
    %v68 = vld [vmem:[#allocation3 + $0x50] sm:$0xff]
    %v69 = vld [vmem:[#allocation3 + $0x58] sm:$0xff]
    %v70 = vld [vmem:[#allocation3 + $0x60] sm:$0xff]
    %v71 = vld [vmem:[#allocation3 + $0x68] sm:$0xff]
    %v72 = vld [vmem:[#allocation3 + $0x70] sm:$0xff]
    %v73 = vld [vmem:[#allocation3 + $0x78] sm:$0xff]
    %v74 = vld [vmem:[#allocation5] sm:$0xff]
    %v75 = vld [vmem:[#allocation5 + $0x8] sm:$0xff]
    %v76 = vld [vmem:[#allocation5 + $0x10] sm:$0xff]
    %v77 = vld [vmem:[#allocation5 + $0x18] sm:$0xff]
    %v78 = vld [vmem:[#allocation5 + $0x20] sm:$0xff]
    %v79 = vld [vmem:[#allocation5 + $0x28] sm:$0xff]
    %v80 = vld [vmem:[#allocation5 + $0x30] sm:$0xff]
    %v81 = vld [vmem:[#allocation5 + $0x38] sm:$0xff]
    %v82 = vld [vmem:[#allocation5 + $0x40] sm:$0xff]
    %v83 = vld [vmem:[#allocation5 + $0x48] sm:$0xff]
    %v84 = vld [vmem:[#allocation5 + $0x50] sm:$0xff]
    %v85 = vld [vmem:[#allocation5 + $0x58] sm:$0xff]
    %v86 = vld [vmem:[#allocation5 + $0x60] sm:$0xff]
    %v87 = vld [vmem:[#allocation5 + $0x68] sm:$0xff]
    %v88 = vld [vmem:[#allocation5 + $0x70] sm:$0xff]
    %v89 = vld [vmem:[#allocation5 + $0x78] sm:$0xff]
    %v90 = vld [vmem:[%s5] sm:$0x1]
    %v91 = vld [vmem:[#allocation2] sm:$0xff]
    %v92 = vtanh.pop %v91
    %v93 = vmax.f32 %v92, 0.0
    %v94 = vmul.f32 %v91, 0.9
    %v95 = vld [vmem:[%s1] sm:$0xff]
    %97 = vset.pattern.permute.xlu0 0
    %98 = vperm.xlu0 %97, %v95
    %v99 = vpop.permute.xlu0 %98
    %v102 = vlaneseq
    %v103 = vshrl.u32 %v102, 7
    %v104 = vsub.s32 0, %v103
    %v105 = vrot.slane %v57, %v104
    %v107 = vmul.f32 %v99, %v105
    %108 = vmatprep.subr.mxu0 0.0
    %109 = vmatpush1.msra.mxu0 %v73
    %110 = vmatprep.subr.mxu0 0.0
    %111 = vmatpush1.msra.mxu0 %v72
    %112 = vmatprep.subr.mxu0 0.0
    %113 = vmatpush1.msra.mxu0 %v71
    %114 = vmatprep.subr.mxu0 0.0
    %115 = vmatpush1.msra.mxu0 %v70
    %116 = vmatprep.subr.mxu0 0.0
    %117 = vmatpush1.msra.mxu0 %v69
    %118 = vmatprep.subr.mxu0 0.0
    %119 = vmatpush1.msra.mxu0 %v68
    %120 = vmatprep.subr.mxu0 0.0
    %121 = vmatpush1.msra.mxu0 %v67
    %122 = vmatprep.subr.mxu0 0.0
    %123 = vmatpush1.msra.mxu0 %v66
    %124 = vmatprep.subr.mxu0 0.0
    %125 = vmatpush1.msra.mxu0 %v65
    %126 = vmatprep.subr.mxu0 0.0
    %127 = vmatpush1.msra.mxu0 %v64
    %128 = vmatprep.subr.mxu0 0.0
    %129 = vmatpush1.msra.mxu0 %v63
    %130 = vmatprep.subr.mxu0 0.0
    %131 = vmatpush1.msra.mxu0 %v62
    %132 = vmatprep.subr.mxu0 0.0
    %133 = vmatpush1.msra.mxu0 %v61
    %134 = vmatprep.subr.mxu0 0.0
    %135 = vmatpush1.msra.mxu0 %v60
    %136 = vmatprep.subr.mxu0 0.0
    %137 = vmatpush1.msra.mxu0 %v59
    %138 = vmatprep.subr.mxu0 0.0
    %139 = vmatpush1.msra.mxu0 %v58
    %140 = vmatprep.subr.mxu0 0.0
    %141 = vmatpush2.msra.mxu0 0.0
    %142 = vmatprep.subr.mxu0 0.0
    %143 = vmatpush2.msra.mxu0 0.0
    %144 = vmatprep.subr.mxu0 0.0
    %145 = vmatpush2.msra.mxu0 0.0
    %146 = vmatprep.subr.mxu0 0.0
    %147 = vmatpush2.msra.mxu0 0.0
    %148 = vmatprep.subr.mxu0 0.0
    %149 = vmatpush2.msra.mxu0 0.0
    %150 = vmatprep.subr.mxu0 0.0
    %151 = vmatpush2.msra.mxu0 0.0
    %152 = vmatprep.subr.mxu0 0.0
    %153 = vmatpush2.msra.mxu0 0.0
    %154 = vmatprep.subr.mxu0 0.0
    %155 = vmatpush2.msra.mxu0 0.0
    %156 = vmatprep.subr.mxu0 0.0
    %157 = vmatpush2.msra.mxu0 0.0
    %158 = vmatprep.subr.mxu0 0.0
    %159 = vmatpush2.msra.mxu0 0.0
    %160 = vmatprep.subr.mxu0 0.0
    %161 = vmatpush2.msra.mxu0 0.0
    %162 = vmatprep.subr.mxu0 0.0
    %163 = vmatpush2.msra.mxu0 0.0
    %164 = vmatprep.subr.mxu0 0.0
    %165 = vmatpush2.msra.mxu0 0.0
    %166 = vmatprep.subr.mxu0 0.0
    %167 = vmatpush2.msra.mxu0 0.0
    %168 = vmatprep.subr.mxu0 0.0
    %169 = vmatpush2.msra.mxu0 0.0
    %170 = vmatprep.subr.mxu0 0.0
    %171 = vmatpush2.msra.mxu0 0.0
    %172 = vmatprep.mubr.f32.mxu0 0.0
    %173 = vmatmul.mubr.f32.gmra.mxu0 %v93
    %v174 = vpop.f32.mrf.mxu0
    %v175 = vadd.f32 %v107, %v174
    %v176 = vpop.f32.mrf.mxu0
    %177 = vdwg.mxu0
    %v179 = vlaneseq
    %v180 = vshrl.u32 %v179, 7
    %v181 = vsub.s32 0, %v180
    %v182 = vrot.slane %v90, %v181
    %v184 = vadd.f32 %v175, %v182
    %v185 = vmul.f32 %v184, 0.1
    %v186 = vadd.f32 %v94, %v185
    %v187 = vtanh.pop %v186
    %v188 = vmax.f32 %v187, 0.0
    %189 = vmatprep.subr.mxu0 0.0
    %190 = vmatpush1.msra.mxu0 %v89
    %191 = vmatprep.subr.mxu0 0.0
    %192 = vmatpush1.msra.mxu0 %v88
    %193 = vmatprep.subr.mxu0 0.0
    %194 = vmatpush1.msra.mxu0 %v87
    %195 = vmatprep.subr.mxu0 0.0
    %196 = vmatpush1.msra.mxu0 %v86
    %197 = vmatprep.subr.mxu0 0.0
    %198 = vmatpush1.msra.mxu0 %v85
    %199 = vmatprep.subr.mxu0 0.0
    %200 = vmatpush1.msra.mxu0 %v84
    %201 = vmatprep.subr.mxu0 0.0
    %202 = vmatpush1.msra.mxu0 %v83
    %203 = vmatprep.subr.mxu0 0.0
    %204 = vmatpush1.msra.mxu0 %v82
    %205 = vmatprep.subr.mxu0 0.0
    %206 = vmatpush1.msra.mxu0 %v81
    %207 = vmatprep.subr.mxu0 0.0
    %208 = vmatpush1.msra.mxu0 %v80
    %209 = vmatprep.subr.mxu0 0.0
    %210 = vmatpush1.msra.mxu0 %v79
    %211 = vmatprep.subr.mxu0 0.0
    %212 = vmatpush1.msra.mxu0 %v78
    %213 = vmatprep.subr.mxu0 0.0
    %214 = vmatpush1.msra.mxu0 %v77
    %215 = vmatprep.subr.mxu0 0.0
    %216 = vmatpush1.msra.mxu0 %v76
    %217 = vmatprep.subr.mxu0 0.0
    %218 = vmatpush1.msra.mxu0 %v75
    %219 = vmatprep.subr.mxu0 0.0
    %220 = vmatpush1.msra.mxu0 %v74
    %221 = vmatprep.subr.mxu0 0.0
    %222 = vmatpush2.msra.mxu0 0.0
    %223 = vmatprep.subr.mxu0 0.0
    %224 = vmatpush2.msra.mxu0 0.0
    %225 = vmatprep.subr.mxu0 0.0
    %226 = vmatpush2.msra.mxu0 0.0
    %227 = vmatprep.subr.mxu0 0.0
    %228 = vmatpush2.msra.mxu0 0.0
    %229 = vmatprep.subr.mxu0 0.0
    %230 = vmatpush2.msra.mxu0 0.0
    %231 = vmatprep.subr.mxu0 0.0
    %232 = vmatpush2.msra.mxu0 0.0
    %233 = vmatprep.subr.mxu0 0.0
    %234 = vmatpush2.msra.mxu0 0.0
    %235 = vmatprep.subr.mxu0 0.0
    %236 = vmatpush2.msra.mxu0 0.0
    %237 = vmatprep.subr.mxu0 0.0
    %238 = vmatpush2.msra.mxu0 0.0
    %239 = vmatprep.subr.mxu0 0.0
    %240 = vmatpush2.msra.mxu0 0.0
    %241 = vmatprep.subr.mxu0 0.0
    %242 = vmatpush2.msra.mxu0 0.0
    %243 = vmatprep.subr.mxu0 0.0
    %244 = vmatpush2.msra.mxu0 0.0
    %245 = vmatprep.subr.mxu0 0.0
    %246 = vmatpush2.msra.mxu0 0.0
    %247 = vmatprep.subr.mxu0 0.0
    %248 = vmatpush2.msra.mxu0 0.0
    %249 = vmatprep.subr.mxu0 0.0
    %250 = vmatpush2.msra.mxu0 0.0
    %251 = vmatprep.subr.mxu0 0.0
    %252 = vmatpush2.msra.mxu0 0.0
    %253 = vmatprep.mubr.f32.mxu0 0.0
    %254 = vmatmul.mubr.f32.gmra.mxu0 %v188
    %v255 = vpop.f32.mrf.mxu0
    %v256 = vadd.f32 0.0, %v255
    %v257 = vpop.f32.mrf.mxu0
    %258 = vdwg.mxu0
    %vm259 = vcmask 15360
    %260 = vst.msk [vmem:[%s6] sm:$0xff] %vm259, %v256
    %v261 = vmul.f32 %v186, 0.9
    %s262 = scalar_lea.vmem %s1, 8
    %v263 = vld [vmem:[%s262] sm:$0xff]
    %265 = vset.pattern.permute.xlu0 0
    %266 = vperm.xlu0 %265, %v263
    %v267 = vpop.permute.xlu0 %266
    %v269 = vmul.f32 %v267, %v105
    %270 = vmatprep.subr.mxu0 0.0
    %271 = vmatpush1.msra.mxu0 %v73
    %272 = vmatprep.subr.mxu0 0.0
    %273 = vmatpush1.msra.mxu0 %v72
    %274 = vmatprep.subr.mxu0 0.0
    %275 = vmatpush1.msra.mxu0 %v71
    %276 = vmatprep.subr.mxu0 0.0
    %277 = vmatpush1.msra.mxu0 %v70
    %278 = vmatprep.subr.mxu0 0.0
    %279 = vmatpush1.msra.mxu0 %v69
    %280 = vmatprep.subr.mxu0 0.0
    %281 = vmatpush1.msra.mxu0 %v68
    %282 = vmatprep.subr.mxu0 0.0
    %283 = vmatpush1.msra.mxu0 %v67
    %284 = vmatprep.subr.mxu0 0.0
    %285 = vmatpush1.msra.mxu0 %v66
    %286 = vmatprep.subr.mxu0 0.0
    %287 = vmatpush1.msra.mxu0 %v65
    %288 = vmatprep.subr.mxu0 0.0
    %289 = vmatpush1.msra.mxu0 %v64
    %290 = vmatprep.subr.mxu0 0.0
    %291 = vmatpush1.msra.mxu0 %v63
    %292 = vmatprep.subr.mxu0 0.0
    %293 = vmatpush1.msra.mxu0 %v62
    %294 = vmatprep.subr.mxu0 0.0
    %295 = vmatpush1.msra.mxu0 %v61
    %296 = vmatprep.subr.mxu0 0.0
    %297 = vmatpush1.msra.mxu0 %v60
    %298 = vmatprep.subr.mxu0 0.0
    %299 = vmatpush1.msra.mxu0 %v59
    %300 = vmatprep.subr.mxu0 0.0
    %301 = vmatpush1.msra.mxu0 %v58
    %302 = vmatprep.subr.mxu0 0.0
    %303 = vmatpush2.msra.mxu0 0.0
    %304 = vmatprep.subr.mxu0 0.0
    %305 = vmatpush2.msra.mxu0 0.0
    %306 = vmatprep.subr.mxu0 0.0
    %307 = vmatpush2.msra.mxu0 0.0
    %308 = vmatprep.subr.mxu0 0.0
    %309 = vmatpush2.msra.mxu0 0.0
    %310 = vmatprep.subr.mxu0 0.0
    %311 = vmatpush2.msra.mxu0 0.0
    %312 = vmatprep.subr.mxu0 0.0
    %313 = vmatpush2.msra.mxu0 0.0
    %314 = vmatprep.subr.mxu0 0.0
    %315 = vmatpush2.msra.mxu0 0.0
    %316 = vmatprep.subr.mxu0 0.0
    %317 = vmatpush2.msra.mxu0 0.0
    %318 = vmatprep.subr.mxu0 0.0
    %319 = vmatpush2.msra.mxu0 0.0
    %320 = vmatprep.subr.mxu0 0.0
    %321 = vmatpush2.msra.mxu0 0.0
    %322 = vmatprep.subr.mxu0 0.0
    %323 = vmatpush2.msra.mxu0 0.0
    %324 = vmatprep.subr.mxu0 0.0
    %325 = vmatpush2.msra.mxu0 0.0
    %326 = vmatprep.subr.mxu0 0.0
    %327 = vmatpush2.msra.mxu0 0.0
    %328 = vmatprep.subr.mxu0 0.0
    %329 = vmatpush2.msra.mxu0 0.0
    %330 = vmatprep.subr.mxu0 0.0
    %331 = vmatpush2.msra.mxu0 0.0
    %332 = vmatprep.subr.mxu0 0.0
    %333 = vmatpush2.msra.mxu0 0.0
    %334 = vmatprep.mubr.f32.mxu0 0.0
    %335 = vmatmul.mubr.f32.gmra.mxu0 %v188
    %v336 = vpop.f32.mrf.mxu0
    %v337 = vadd.f32 %v269, %v336
    %v338 = vpop.f32.mrf.mxu0
    %339 = vdwg.mxu0
    %v340 = vadd.f32 %v337, %v182
    %v341 = vmul.f32 %v340, 0.1
    %v342 = vadd.f32 %v261, %v341
    %v343 = vtanh.pop %v342
    %v344 = vmax.f32 %v343, 0.0
    %345 = vmatprep.subr.mxu0 0.0
    %346 = vmatpush1.msra.mxu0 %v89
    %347 = vmatprep.subr.mxu0 0.0
    %348 = vmatpush1.msra.mxu0 %v88
    %349 = vmatprep.subr.mxu0 0.0
    %350 = vmatpush1.msra.mxu0 %v87
    %351 = vmatprep.subr.mxu0 0.0
    %352 = vmatpush1.msra.mxu0 %v86
    %353 = vmatprep.subr.mxu0 0.0
    %354 = vmatpush1.msra.mxu0 %v85
    %355 = vmatprep.subr.mxu0 0.0
    %356 = vmatpush1.msra.mxu0 %v84
    %357 = vmatprep.subr.mxu0 0.0
    %358 = vmatpush1.msra.mxu0 %v83
    %359 = vmatprep.subr.mxu0 0.0
    %360 = vmatpush1.msra.mxu0 %v82
    %361 = vmatprep.subr.mxu0 0.0
    %362 = vmatpush1.msra.mxu0 %v81
    %363 = vmatprep.subr.mxu0 0.0
    %364 = vmatpush1.msra.mxu0 %v80
    %365 = vmatprep.subr.mxu0 0.0
    %366 = vmatpush1.msra.mxu0 %v79
    %367 = vmatprep.subr.mxu0 0.0
    %368 = vmatpush1.msra.mxu0 %v78
    %369 = vmatprep.subr.mxu0 0.0
    %370 = vmatpush1.msra.mxu0 %v77
    %371 = vmatprep.subr.mxu0 0.0
    %372 = vmatpush1.msra.mxu0 %v76
    %373 = vmatprep.subr.mxu0 0.0
    %374 = vmatpush1.msra.mxu0 %v75
    %375 = vmatprep.subr.mxu0 0.0
    %376 = vmatpush1.msra.mxu0 %v74
    %377 = vmatprep.subr.mxu0 0.0
    %378 = vmatpush2.msra.mxu0 0.0
    %379 = vmatprep.subr.mxu0 0.0
    %380 = vmatpush2.msra.mxu0 0.0
    %381 = vmatprep.subr.mxu0 0.0
    %382 = vmatpush2.msra.mxu0 0.0
    %383 = vmatprep.subr.mxu0 0.0
    %384 = vmatpush2.msra.mxu0 0.0
    %385 = vmatprep.subr.mxu0 0.0
    %386 = vmatpush2.msra.mxu0 0.0
    %387 = vmatprep.subr.mxu0 0.0
    %388 = vmatpush2.msra.mxu0 0.0
    %389 = vmatprep.subr.mxu0 0.0
    %390 = vmatpush2.msra.mxu0 0.0
    %391 = vmatprep.subr.mxu0 0.0
    %392 = vmatpush2.msra.mxu0 0.0
    %393 = vmatprep.subr.mxu0 0.0
    %394 = vmatpush2.msra.mxu0 0.0
    %395 = vmatprep.subr.mxu0 0.0
    %396 = vmatpush2.msra.mxu0 0.0
    %397 = vmatprep.subr.mxu0 0.0
    %398 = vmatpush2.msra.mxu0 0.0
    %399 = vmatprep.subr.mxu0 0.0
    %400 = vmatpush2.msra.mxu0 0.0
    %401 = vmatprep.subr.mxu0 0.0
    %402 = vmatpush2.msra.mxu0 0.0
    %403 = vmatprep.subr.mxu0 0.0
    %404 = vmatpush2.msra.mxu0 0.0
    %405 = vmatprep.subr.mxu0 0.0
    %406 = vmatpush2.msra.mxu0 0.0
    %407 = vmatprep.subr.mxu0 0.0
    %408 = vmatpush2.msra.mxu0 0.0
    %409 = vmatprep.mubr.f32.mxu0 0.0
    %410 = vmatmul.mubr.f32.gmra.mxu0 %v344
    %v411 = vpop.f32.mrf.mxu0
    %v412 = vadd.f32 0.0, %v411
    %v413 = vpop.f32.mrf.mxu0
    %414 = vdwg.mxu0
    %s415 = scalar_lea.vmem %s6, 8
    %416 = vst.msk [vmem:[%s415] sm:$0xff] %vm259, %v412
    %v417 = vmul.f32 %v342, 0.9
    %s418 = scalar_lea.vmem %s1, 16
    %v419 = vld [vmem:[%s418] sm:$0xff]
    %421 = vset.pattern.permute.xlu0 0
    %422 = vperm.xlu0 %421, %v419
    %v423 = vpop.permute.xlu0 %422
    %v425 = vmul.f32 %v423, %v105
    %426 = vmatprep.subr.mxu0 0.0
    %427 = vmatpush1.msra.mxu0 %v73
    %428 = vmatprep.subr.mxu0 0.0
    %429 = vmatpush1.msra.mxu0 %v72
    %430 = vmatprep.subr.mxu0 0.0
    %431 = vmatpush1.msra.mxu0 %v71
    %432 = vmatprep.subr.mxu0 0.0
    %433 = vmatpush1.msra.mxu0 %v70
    %434 = vmatprep.subr.mxu0 0.0
    %435 = vmatpush1.msra.mxu0 %v69
    %436 = vmatprep.subr.mxu0 0.0
    %437 = vmatpush1.msra.mxu0 %v68
    %438 = vmatprep.subr.mxu0 0.0
    %439 = vmatpush1.msra.mxu0 %v67
    %440 = vmatprep.subr.mxu0 0.0
    %441 = vmatpush1.msra.mxu0 %v66
    %442 = vmatprep.subr.mxu0 0.0
    %443 = vmatpush1.msra.mxu0 %v65
    %444 = vmatprep.subr.mxu0 0.0
    %445 = vmatpush1.msra.mxu0 %v64
    %446 = vmatprep.subr.mxu0 0.0
    %447 = vmatpush1.msra.mxu0 %v63
    %448 = vmatprep.subr.mxu0 0.0
    %449 = vmatpush1.msra.mxu0 %v62
    %450 = vmatprep.subr.mxu0 0.0
    %451 = vmatpush1.msra.mxu0 %v61
    %452 = vmatprep.subr.mxu0 0.0
    %453 = vmatpush1.msra.mxu0 %v60
    %454 = vmatprep.subr.mxu0 0.0
    %455 = vmatpush1.msra.mxu0 %v59
    %456 = vmatprep.subr.mxu0 0.0
    %457 = vmatpush1.msra.mxu0 %v58
    %458 = vmatprep.subr.mxu0 0.0
    %459 = vmatpush2.msra.mxu0 0.0
    %460 = vmatprep.subr.mxu0 0.0
    %461 = vmatpush2.msra.mxu0 0.0
    %462 = vmatprep.subr.mxu0 0.0
    %463 = vmatpush2.msra.mxu0 0.0
    %464 = vmatprep.subr.mxu0 0.0
    %465 = vmatpush2.msra.mxu0 0.0
    %466 = vmatprep.subr.mxu0 0.0
    %467 = vmatpush2.msra.mxu0 0.0
    %468 = vmatprep.subr.mxu0 0.0
    %469 = vmatpush2.msra.mxu0 0.0
    %470 = vmatprep.subr.mxu0 0.0
    %471 = vmatpush2.msra.mxu0 0.0
    %472 = vmatprep.subr.mxu0 0.0
    %473 = vmatpush2.msra.mxu0 0.0
    %474 = vmatprep.subr.mxu0 0.0
    %475 = vmatpush2.msra.mxu0 0.0
    %476 = vmatprep.subr.mxu0 0.0
    %477 = vmatpush2.msra.mxu0 0.0
    %478 = vmatprep.subr.mxu0 0.0
    %479 = vmatpush2.msra.mxu0 0.0
    %480 = vmatprep.subr.mxu0 0.0
    %481 = vmatpush2.msra.mxu0 0.0
    %482 = vmatprep.subr.mxu0 0.0
    %483 = vmatpush2.msra.mxu0 0.0
    %484 = vmatprep.subr.mxu0 0.0
    %485 = vmatpush2.msra.mxu0 0.0
    %486 = vmatprep.subr.mxu0 0.0
    %487 = vmatpush2.msra.mxu0 0.0
    %488 = vmatprep.subr.mxu0 0.0
    %489 = vmatpush2.msra.mxu0 0.0
    %490 = vmatprep.mubr.f32.mxu0 0.0
    %491 = vmatmul.mubr.f32.gmra.mxu0 %v344
    %v492 = vpop.f32.mrf.mxu0
    %v493 = vadd.f32 %v425, %v492
    %v494 = vpop.f32.mrf.mxu0
    %495 = vdwg.mxu0
    %v496 = vadd.f32 %v493, %v182
    %v497 = vmul.f32 %v496, 0.1
    %v498 = vadd.f32 %v417, %v497
    %v499 = vtanh.pop %v498
    %v500 = vmax.f32 %v499, 0.0
    %501 = vmatprep.subr.mxu0 0.0
    %502 = vmatpush1.msra.mxu0 %v89
    %503 = vmatprep.subr.mxu0 0.0
    %504 = vmatpush1.msra.mxu0 %v88
    %505 = vmatprep.subr.mxu0 0.0
    %506 = vmatpush1.msra.mxu0 %v87
    %507 = vmatprep.subr.mxu0 0.0
    %508 = vmatpush1.msra.mxu0 %v86
    %509 = vmatprep.subr.mxu0 0.0
    %510 = vmatpush1.msra.mxu0 %v85
    %511 = vmatprep.subr.mxu0 0.0
    %512 = vmatpush1.msra.mxu0 %v84
    %513 = vmatprep.subr.mxu0 0.0
    %514 = vmatpush1.msra.mxu0 %v83
    %515 = vmatprep.subr.mxu0 0.0
    %516 = vmatpush1.msra.mxu0 %v82
    %517 = vmatprep.subr.mxu0 0.0
    %518 = vmatpush1.msra.mxu0 %v81
    %519 = vmatprep.subr.mxu0 0.0
    %520 = vmatpush1.msra.mxu0 %v80
    %521 = vmatprep.subr.mxu0 0.0
    %522 = vmatpush1.msra.mxu0 %v79
    %523 = vmatprep.subr.mxu0 0.0
    %524 = vmatpush1.msra.mxu0 %v78
    %525 = vmatprep.subr.mxu0 0.0
    %526 = vmatpush1.msra.mxu0 %v77
    %527 = vmatprep.subr.mxu0 0.0
    %528 = vmatpush1.msra.mxu0 %v76
    %529 = vmatprep.subr.mxu0 0.0
    %530 = vmatpush1.msra.mxu0 %v75
    %531 = vmatprep.subr.mxu0 0.0
    %532 = vmatpush1.msra.mxu0 %v74
    %533 = vmatprep.subr.mxu0 0.0
    %534 = vmatpush2.msra.mxu0 0.0
    %535 = vmatprep.subr.mxu0 0.0
    %536 = vmatpush2.msra.mxu0 0.0
    %537 = vmatprep.subr.mxu0 0.0
    %538 = vmatpush2.msra.mxu0 0.0
    %539 = vmatprep.subr.mxu0 0.0
    %540 = vmatpush2.msra.mxu0 0.0
    %541 = vmatprep.subr.mxu0 0.0
    %542 = vmatpush2.msra.mxu0 0.0
    %543 = vmatprep.subr.mxu0 0.0
    %544 = vmatpush2.msra.mxu0 0.0
    %545 = vmatprep.subr.mxu0 0.0
    %546 = vmatpush2.msra.mxu0 0.0
    %547 = vmatprep.subr.mxu0 0.0
    %548 = vmatpush2.msra.mxu0 0.0
    %549 = vmatprep.subr.mxu0 0.0
    %550 = vmatpush2.msra.mxu0 0.0
    %551 = vmatprep.subr.mxu0 0.0
    %552 = vmatpush2.msra.mxu0 0.0
    %553 = vmatprep.subr.mxu0 0.0
    %554 = vmatpush2.msra.mxu0 0.0
    %555 = vmatprep.subr.mxu0 0.0
    %556 = vmatpush2.msra.mxu0 0.0
    %557 = vmatprep.subr.mxu0 0.0
    %558 = vmatpush2.msra.mxu0 0.0
    %559 = vmatprep.subr.mxu0 0.0
    %560 = vmatpush2.msra.mxu0 0.0
    %561 = vmatprep.subr.mxu0 0.0
    %562 = vmatpush2.msra.mxu0 0.0
    %563 = vmatprep.subr.mxu0 0.0
    %564 = vmatpush2.msra.mxu0 0.0
    %565 = vmatprep.mubr.f32.mxu0 0.0
    %566 = vmatmul.mubr.f32.gmra.mxu0 %v500
    %v567 = vpop.f32.mrf.mxu0
    %v568 = vadd.f32 0.0, %v567
    %v569 = vpop.f32.mrf.mxu0
    %570 = vdwg.mxu0
    %s571 = scalar_lea.vmem %s6, 16
    %572 = vst.msk [vmem:[%s571] sm:$0xff] %vm259, %v568
    %v573 = vmul.f32 %v498, 0.9
    %s574 = scalar_lea.vmem %s1, 24
    %v575 = vld [vmem:[%s574] sm:$0xff]
    %577 = vset.pattern.permute.xlu0 0
    %578 = vperm.xlu0 %577, %v575
    %v579 = vpop.permute.xlu0 %578
    %v581 = vmul.f32 %v579, %v105
    %582 = vmatprep.subr.mxu0 0.0
    %583 = vmatpush1.msra.mxu0 %v73
    %584 = vmatprep.subr.mxu0 0.0
    %585 = vmatpush1.msra.mxu0 %v72
    %586 = vmatprep.subr.mxu0 0.0
    %587 = vmatpush1.msra.mxu0 %v71
    %588 = vmatprep.subr.mxu0 0.0
    %589 = vmatpush1.msra.mxu0 %v70
    %590 = vmatprep.subr.mxu0 0.0
    %591 = vmatpush1.msra.mxu0 %v69
    %592 = vmatprep.subr.mxu0 0.0
    %593 = vmatpush1.msra.mxu0 %v68
    %594 = vmatprep.subr.mxu0 0.0
    %595 = vmatpush1.msra.mxu0 %v67
    %596 = vmatprep.subr.mxu0 0.0
    %597 = vmatpush1.msra.mxu0 %v66
    %598 = vmatprep.subr.mxu0 0.0
    %599 = vmatpush1.msra.mxu0 %v65
    %600 = vmatprep.subr.mxu0 0.0
    %601 = vmatpush1.msra.mxu0 %v64
    %602 = vmatprep.subr.mxu0 0.0
    %603 = vmatpush1.msra.mxu0 %v63
    %604 = vmatprep.subr.mxu0 0.0
    %605 = vmatpush1.msra.mxu0 %v62
    %606 = vmatprep.subr.mxu0 0.0
    %607 = vmatpush1.msra.mxu0 %v61
    %608 = vmatprep.subr.mxu0 0.0
    %609 = vmatpush1.msra.mxu0 %v60
    %610 = vmatprep.subr.mxu0 0.0
    %611 = vmatpush1.msra.mxu0 %v59
    %612 = vmatprep.subr.mxu0 0.0
    %613 = vmatpush1.msra.mxu0 %v58
    %614 = vmatprep.subr.mxu0 0.0
    %615 = vmatpush2.msra.mxu0 0.0
    %616 = vmatprep.subr.mxu0 0.0
    %617 = vmatpush2.msra.mxu0 0.0
    %618 = vmatprep.subr.mxu0 0.0
    %619 = vmatpush2.msra.mxu0 0.0
    %620 = vmatprep.subr.mxu0 0.0
    %621 = vmatpush2.msra.mxu0 0.0
    %622 = vmatprep.subr.mxu0 0.0
    %623 = vmatpush2.msra.mxu0 0.0
    %624 = vmatprep.subr.mxu0 0.0
    %625 = vmatpush2.msra.mxu0 0.0
    %626 = vmatprep.subr.mxu0 0.0
    %627 = vmatpush2.msra.mxu0 0.0
    %628 = vmatprep.subr.mxu0 0.0
    %629 = vmatpush2.msra.mxu0 0.0
    %630 = vmatprep.subr.mxu0 0.0
    %631 = vmatpush2.msra.mxu0 0.0
    %632 = vmatprep.subr.mxu0 0.0
    %633 = vmatpush2.msra.mxu0 0.0
    %634 = vmatprep.subr.mxu0 0.0
    %635 = vmatpush2.msra.mxu0 0.0
    %636 = vmatprep.subr.mxu0 0.0
    %637 = vmatpush2.msra.mxu0 0.0
    %638 = vmatprep.subr.mxu0 0.0
    %639 = vmatpush2.msra.mxu0 0.0
    %640 = vmatprep.subr.mxu0 0.0
    %641 = vmatpush2.msra.mxu0 0.0
    %642 = vmatprep.subr.mxu0 0.0
    %643 = vmatpush2.msra.mxu0 0.0
    %644 = vmatprep.subr.mxu0 0.0
    %645 = vmatpush2.msra.mxu0 0.0
    %646 = vmatprep.mubr.f32.mxu0 0.0
    %647 = vmatmul.mubr.f32.gmra.mxu0 %v500
    %v648 = vpop.f32.mrf.mxu0
    %v649 = vadd.f32 %v581, %v648
    %v650 = vpop.f32.mrf.mxu0
    %651 = vdwg.mxu0
    %v652 = vadd.f32 %v649, %v182
    %v653 = vmul.f32 %v652, 0.1
    %v654 = vadd.f32 %v573, %v653
    %v655 = vtanh.pop %v654
    %v656 = vmax.f32 %v655, 0.0
    %657 = vmatprep.subr.mxu0 0.0
    %658 = vmatpush1.msra.mxu0 %v89
    %659 = vmatprep.subr.mxu0 0.0
    %660 = vmatpush1.msra.mxu0 %v88
    %661 = vmatprep.subr.mxu0 0.0
    %662 = vmatpush1.msra.mxu0 %v87
    %663 = vmatprep.subr.mxu0 0.0
    %664 = vmatpush1.msra.mxu0 %v86
    %665 = vmatprep.subr.mxu0 0.0
    %666 = vmatpush1.msra.mxu0 %v85
    %667 = vmatprep.subr.mxu0 0.0
    %668 = vmatpush1.msra.mxu0 %v84
    %669 = vmatprep.subr.mxu0 0.0
    %670 = vmatpush1.msra.mxu0 %v83
    %671 = vmatprep.subr.mxu0 0.0
    %672 = vmatpush1.msra.mxu0 %v82
    %673 = vmatprep.subr.mxu0 0.0
    %674 = vmatpush1.msra.mxu0 %v81
    %675 = vmatprep.subr.mxu0 0.0
    %676 = vmatpush1.msra.mxu0 %v80
    %677 = vmatprep.subr.mxu0 0.0
    %678 = vmatpush1.msra.mxu0 %v79
    %679 = vmatprep.subr.mxu0 0.0
    %680 = vmatpush1.msra.mxu0 %v78
    %681 = vmatprep.subr.mxu0 0.0
    %682 = vmatpush1.msra.mxu0 %v77
    %683 = vmatprep.subr.mxu0 0.0
    %684 = vmatpush1.msra.mxu0 %v76
    %685 = vmatprep.subr.mxu0 0.0
    %686 = vmatpush1.msra.mxu0 %v75
    %687 = vmatprep.subr.mxu0 0.0
    %688 = vmatpush1.msra.mxu0 %v74
    %689 = vmatprep.subr.mxu0 0.0
    %690 = vmatpush2.msra.mxu0 0.0
    %691 = vmatprep.subr.mxu0 0.0
    %692 = vmatpush2.msra.mxu0 0.0
    %693 = vmatprep.subr.mxu0 0.0
    %694 = vmatpush2.msra.mxu0 0.0
    %695 = vmatprep.subr.mxu0 0.0
    %696 = vmatpush2.msra.mxu0 0.0
    %697 = vmatprep.subr.mxu0 0.0
    %698 = vmatpush2.msra.mxu0 0.0
    %699 = vmatprep.subr.mxu0 0.0
    %700 = vmatpush2.msra.mxu0 0.0
    %701 = vmatprep.subr.mxu0 0.0
    %702 = vmatpush2.msra.mxu0 0.0
    %703 = vmatprep.subr.mxu0 0.0
    %704 = vmatpush2.msra.mxu0 0.0
    %705 = vmatprep.subr.mxu0 0.0
    %706 = vmatpush2.msra.mxu0 0.0
    %707 = vmatprep.subr.mxu0 0.0
    %708 = vmatpush2.msra.mxu0 0.0
    %709 = vmatprep.subr.mxu0 0.0
    %710 = vmatpush2.msra.mxu0 0.0
    %711 = vmatprep.subr.mxu0 0.0
    %712 = vmatpush2.msra.mxu0 0.0
    %713 = vmatprep.subr.mxu0 0.0
    %714 = vmatpush2.msra.mxu0 0.0
    %715 = vmatprep.subr.mxu0 0.0
    %716 = vmatpush2.msra.mxu0 0.0
    %717 = vmatprep.subr.mxu0 0.0
    %718 = vmatpush2.msra.mxu0 0.0
    %719 = vmatprep.subr.mxu0 0.0
    %720 = vmatpush2.msra.mxu0 0.0
    %721 = vmatprep.mubr.f32.mxu0 0.0
    %722 = vmatmul.mubr.f32.gmra.mxu0 %v656
    %v723 = vpop.f32.mrf.mxu0
    %v724 = vadd.f32 0.0, %v723
    %v725 = vpop.f32.mrf.mxu0
    %726 = vdwg.mxu0
    %s727 = scalar_lea.vmem %s6, 24
    %728 = vst.msk [vmem:[%s727] sm:$0xff] %vm259, %v724
    %v729 = vmul.f32 %v654, 0.9
    %s730 = scalar_lea.vmem %s1, 32
    %v731 = vld [vmem:[%s730] sm:$0xff]
    %733 = vset.pattern.permute.xlu0 0
    %734 = vperm.xlu0 %733, %v731
    %v735 = vpop.permute.xlu0 %734
    %v737 = vmul.f32 %v735, %v105
    %738 = vmatprep.subr.mxu0 0.0
    %739 = vmatpush1.msra.mxu0 %v73
    %740 = vmatprep.subr.mxu0 0.0
    %741 = vmatpush1.msra.mxu0 %v72
    %742 = vmatprep.subr.mxu0 0.0
    %743 = vmatpush1.msra.mxu0 %v71
    %744 = vmatprep.subr.mxu0 0.0
    %745 = vmatpush1.msra.mxu0 %v70
    %746 = vmatprep.subr.mxu0 0.0
    %747 = vmatpush1.msra.mxu0 %v69
    %748 = vmatprep.subr.mxu0 0.0
    %749 = vmatpush1.msra.mxu0 %v68
    %750 = vmatprep.subr.mxu0 0.0
    %751 = vmatpush1.msra.mxu0 %v67
    %752 = vmatprep.subr.mxu0 0.0
    %753 = vmatpush1.msra.mxu0 %v66
    %754 = vmatprep.subr.mxu0 0.0
    %755 = vmatpush1.msra.mxu0 %v65
    %756 = vmatprep.subr.mxu0 0.0
    %757 = vmatpush1.msra.mxu0 %v64
    %758 = vmatprep.subr.mxu0 0.0
    %759 = vmatpush1.msra.mxu0 %v63
    %760 = vmatprep.subr.mxu0 0.0
    %761 = vmatpush1.msra.mxu0 %v62
    %762 = vmatprep.subr.mxu0 0.0
    %763 = vmatpush1.msra.mxu0 %v61
    %764 = vmatprep.subr.mxu0 0.0
    %765 = vmatpush1.msra.mxu0 %v60
    %766 = vmatprep.subr.mxu0 0.0
    %767 = vmatpush1.msra.mxu0 %v59
    %768 = vmatprep.subr.mxu0 0.0
    %769 = vmatpush1.msra.mxu0 %v58
    %770 = vmatprep.subr.mxu0 0.0
    %771 = vmatpush2.msra.mxu0 0.0
    %772 = vmatprep.subr.mxu0 0.0
    %773 = vmatpush2.msra.mxu0 0.0
    %774 = vmatprep.subr.mxu0 0.0
    %775 = vmatpush2.msra.mxu0 0.0
    %776 = vmatprep.subr.mxu0 0.0
    %777 = vmatpush2.msra.mxu0 0.0
    %778 = vmatprep.subr.mxu0 0.0
    %779 = vmatpush2.msra.mxu0 0.0
    %780 = vmatprep.subr.mxu0 0.0
    %781 = vmatpush2.msra.mxu0 0.0
    %782 = vmatprep.subr.mxu0 0.0
    %783 = vmatpush2.msra.mxu0 0.0
    %784 = vmatprep.subr.mxu0 0.0
    %785 = vmatpush2.msra.mxu0 0.0
    %786 = vmatprep.subr.mxu0 0.0
    %787 = vmatpush2.msra.mxu0 0.0
    %788 = vmatprep.subr.mxu0 0.0
    %789 = vmatpush2.msra.mxu0 0.0
    %790 = vmatprep.subr.mxu0 0.0
    %791 = vmatpush2.msra.mxu0 0.0
    %792 = vmatprep.subr.mxu0 0.0
    %793 = vmatpush2.msra.mxu0 0.0
    %794 = vmatprep.subr.mxu0 0.0
    %795 = vmatpush2.msra.mxu0 0.0
    %796 = vmatprep.subr.mxu0 0.0
    %797 = vmatpush2.msra.mxu0 0.0
    %798 = vmatprep.subr.mxu0 0.0
    %799 = vmatpush2.msra.mxu0 0.0
    %800 = vmatprep.subr.mxu0 0.0
    %801 = vmatpush2.msra.mxu0 0.0
    %802 = vmatprep.mubr.f32.mxu0 0.0
    %803 = vmatmul.mubr.f32.gmra.mxu0 %v656
    %v804 = vpop.f32.mrf.mxu0
    %v805 = vadd.f32 %v737, %v804
    %v806 = vpop.f32.mrf.mxu0
    %807 = vdwg.mxu0
    %v808 = vadd.f32 %v805, %v182
    %v809 = vmul.f32 %v808, 0.1
    %v810 = vadd.f32 %v729, %v809
    %v811 = vtanh.pop %v810
    %v812 = vmax.f32 %v811, 0.0
    %813 = vmatprep.subr.mxu0 0.0
    %814 = vmatpush1.msra.mxu0 %v89
    %815 = vmatprep.subr.mxu0 0.0
    %816 = vmatpush1.msra.mxu0 %v88
    %817 = vmatprep.subr.mxu0 0.0
    %818 = vmatpush1.msra.mxu0 %v87
    %819 = vmatprep.subr.mxu0 0.0
    %820 = vmatpush1.msra.mxu0 %v86
    %821 = vmatprep.subr.mxu0 0.0
    %822 = vmatpush1.msra.mxu0 %v85
    %823 = vmatprep.subr.mxu0 0.0
    %824 = vmatpush1.msra.mxu0 %v84
    %825 = vmatprep.subr.mxu0 0.0
    %826 = vmatpush1.msra.mxu0 %v83
    %827 = vmatprep.subr.mxu0 0.0
    %828 = vmatpush1.msra.mxu0 %v82
    %829 = vmatprep.subr.mxu0 0.0
    %830 = vmatpush1.msra.mxu0 %v81
    %831 = vmatprep.subr.mxu0 0.0
    %832 = vmatpush1.msra.mxu0 %v80
    %833 = vmatprep.subr.mxu0 0.0
    %834 = vmatpush1.msra.mxu0 %v79
    %835 = vmatprep.subr.mxu0 0.0
    %836 = vmatpush1.msra.mxu0 %v78
    %837 = vmatprep.subr.mxu0 0.0
    %838 = vmatpush1.msra.mxu0 %v77
    %839 = vmatprep.subr.mxu0 0.0
    %840 = vmatpush1.msra.mxu0 %v76
    %841 = vmatprep.subr.mxu0 0.0
    %842 = vmatpush1.msra.mxu0 %v75
    %843 = vmatprep.subr.mxu0 0.0
    %844 = vmatpush1.msra.mxu0 %v74
    %845 = vmatprep.subr.mxu0 0.0
    %846 = vmatpush2.msra.mxu0 0.0
    %847 = vmatprep.subr.mxu0 0.0
    %848 = vmatpush2.msra.mxu0 0.0
    %849 = vmatprep.subr.mxu0 0.0
    %850 = vmatpush2.msra.mxu0 0.0
    %851 = vmatprep.subr.mxu0 0.0
    %852 = vmatpush2.msra.mxu0 0.0
    %853 = vmatprep.subr.mxu0 0.0
    %854 = vmatpush2.msra.mxu0 0.0
    %855 = vmatprep.subr.mxu0 0.0
    %856 = vmatpush2.msra.mxu0 0.0
    %857 = vmatprep.subr.mxu0 0.0
    %858 = vmatpush2.msra.mxu0 0.0
    %859 = vmatprep.subr.mxu0 0.0
    %860 = vmatpush2.msra.mxu0 0.0
    %861 = vmatprep.subr.mxu0 0.0
    %862 = vmatpush2.msra.mxu0 0.0
    %863 = vmatprep.subr.mxu0 0.0
    %864 = vmatpush2.msra.mxu0 0.0
    %865 = vmatprep.subr.mxu0 0.0
    %866 = vmatpush2.msra.mxu0 0.0
    %867 = vmatprep.subr.mxu0 0.0
    %868 = vmatpush2.msra.mxu0 0.0
    %869 = vmatprep.subr.mxu0 0.0
    %870 = vmatpush2.msra.mxu0 0.0
    %871 = vmatprep.subr.mxu0 0.0
    %872 = vmatpush2.msra.mxu0 0.0
    %873 = vmatprep.subr.mxu0 0.0
    %874 = vmatpush2.msra.mxu0 0.0
    %875 = vmatprep.subr.mxu0 0.0
    %876 = vmatpush2.msra.mxu0 0.0
    %877 = vmatprep.mubr.f32.mxu0 0.0
    %878 = vmatmul.mubr.f32.gmra.mxu0 %v812
    %v879 = vpop.f32.mrf.mxu0
    %v880 = vadd.f32 0.0, %v879
    %v881 = vpop.f32.mrf.mxu0
    %882 = vdwg.mxu0
    %s883 = scalar_lea.vmem %s6, 32
    %884 = vst.msk [vmem:[%s883] sm:$0xff] %vm259, %v880
    %v885 = vmul.f32 %v810, 0.9
    %s886 = scalar_lea.vmem %s1, 40
    %v887 = vld [vmem:[%s886] sm:$0xff]
    %889 = vset.pattern.permute.xlu0 0
    %890 = vperm.xlu0 %889, %v887
    %v891 = vpop.permute.xlu0 %890
    %v893 = vmul.f32 %v891, %v105
    %894 = vmatprep.subr.mxu0 0.0
    %895 = vmatpush1.msra.mxu0 %v73
    %896 = vmatprep.subr.mxu0 0.0
    %897 = vmatpush1.msra.mxu0 %v72
    %898 = vmatprep.subr.mxu0 0.0
    %899 = vmatpush1.msra.mxu0 %v71
    %900 = vmatprep.subr.mxu0 0.0
    %901 = vmatpush1.msra.mxu0 %v70
    %902 = vmatprep.subr.mxu0 0.0
    %903 = vmatpush1.msra.mxu0 %v69
    %904 = vmatprep.subr.mxu0 0.0
    %905 = vmatpush1.msra.mxu0 %v68
    %906 = vmatprep.subr.mxu0 0.0
    %907 = vmatpush1.msra.mxu0 %v67
    %908 = vmatprep.subr.mxu0 0.0
    %909 = vmatpush1.msra.mxu0 %v66
    %910 = vmatprep.subr.mxu0 0.0
    %911 = vmatpush1.msra.mxu0 %v65
    %912 = vmatprep.subr.mxu0 0.0
    %913 = vmatpush1.msra.mxu0 %v64
    %914 = vmatprep.subr.mxu0 0.0
    %915 = vmatpush1.msra.mxu0 %v63
    %916 = vmatprep.subr.mxu0 0.0
    %917 = vmatpush1.msra.mxu0 %v62
    %918 = vmatprep.subr.mxu0 0.0
    %919 = vmatpush1.msra.mxu0 %v61
    %920 = vmatprep.subr.mxu0 0.0
    %921 = vmatpush1.msra.mxu0 %v60
    %922 = vmatprep.subr.mxu0 0.0
    %923 = vmatpush1.msra.mxu0 %v59
    %924 = vmatprep.subr.mxu0 0.0
    %925 = vmatpush1.msra.mxu0 %v58
    %926 = vmatprep.subr.mxu0 0.0
    %927 = vmatpush2.msra.mxu0 0.0
    %928 = vmatprep.subr.mxu0 0.0
    %929 = vmatpush2.msra.mxu0 0.0
    %930 = vmatprep.subr.mxu0 0.0
    %931 = vmatpush2.msra.mxu0 0.0
    %932 = vmatprep.subr.mxu0 0.0
    %933 = vmatpush2.msra.mxu0 0.0
    %934 = vmatprep.subr.mxu0 0.0
    %935 = vmatpush2.msra.mxu0 0.0
    %936 = vmatprep.subr.mxu0 0.0
    %937 = vmatpush2.msra.mxu0 0.0
    %938 = vmatprep.subr.mxu0 0.0
    %939 = vmatpush2.msra.mxu0 0.0
    %940 = vmatprep.subr.mxu0 0.0
    %941 = vmatpush2.msra.mxu0 0.0
    %942 = vmatprep.subr.mxu0 0.0
    %943 = vmatpush2.msra.mxu0 0.0
    %944 = vmatprep.subr.mxu0 0.0
    %945 = vmatpush2.msra.mxu0 0.0
    %946 = vmatprep.subr.mxu0 0.0
    %947 = vmatpush2.msra.mxu0 0.0
    %948 = vmatprep.subr.mxu0 0.0
    %949 = vmatpush2.msra.mxu0 0.0
    %950 = vmatprep.subr.mxu0 0.0
    %951 = vmatpush2.msra.mxu0 0.0
    %952 = vmatprep.subr.mxu0 0.0
    %953 = vmatpush2.msra.mxu0 0.0
    %954 = vmatprep.subr.mxu0 0.0
    %955 = vmatpush2.msra.mxu0 0.0
    %956 = vmatprep.subr.mxu0 0.0
    %957 = vmatpush2.msra.mxu0 0.0
    %958 = vmatprep.mubr.f32.mxu0 0.0
    %959 = vmatmul.mubr.f32.gmra.mxu0 %v812
    %v960 = vpop.f32.mrf.mxu0
    %v961 = vadd.f32 %v893, %v960
    %v962 = vpop.f32.mrf.mxu0
    %963 = vdwg.mxu0
    %v964 = vadd.f32 %v961, %v182
    %v965 = vmul.f32 %v964, 0.1
    %v966 = vadd.f32 %v885, %v965
    %v967 = vtanh.pop %v966
    %v968 = vmax.f32 %v967, 0.0
    %969 = vmatprep.subr.mxu0 0.0
    %970 = vmatpush1.msra.mxu0 %v89
    %971 = vmatprep.subr.mxu0 0.0
    %972 = vmatpush1.msra.mxu0 %v88
    %973 = vmatprep.subr.mxu0 0.0
    %974 = vmatpush1.msra.mxu0 %v87
    %975 = vmatprep.subr.mxu0 0.0
    %976 = vmatpush1.msra.mxu0 %v86
    %977 = vmatprep.subr.mxu0 0.0
    %978 = vmatpush1.msra.mxu0 %v85
    %979 = vmatprep.subr.mxu0 0.0
    %980 = vmatpush1.msra.mxu0 %v84
    %981 = vmatprep.subr.mxu0 0.0
    %982 = vmatpush1.msra.mxu0 %v83
    %983 = vmatprep.subr.mxu0 0.0
    %984 = vmatpush1.msra.mxu0 %v82
    %985 = vmatprep.subr.mxu0 0.0
    %986 = vmatpush1.msra.mxu0 %v81
    %987 = vmatprep.subr.mxu0 0.0
    %988 = vmatpush1.msra.mxu0 %v80
    %989 = vmatprep.subr.mxu0 0.0
    %990 = vmatpush1.msra.mxu0 %v79
    %991 = vmatprep.subr.mxu0 0.0
    %992 = vmatpush1.msra.mxu0 %v78
    %993 = vmatprep.subr.mxu0 0.0
    %994 = vmatpush1.msra.mxu0 %v77
    %995 = vmatprep.subr.mxu0 0.0
    %996 = vmatpush1.msra.mxu0 %v76
    %997 = vmatprep.subr.mxu0 0.0
    %998 = vmatpush1.msra.mxu0 %v75
    %999 = vmatprep.subr.mxu0 0.0
    %1000 = vmatpush1.msra.mxu0 %v74
    %1001 = vmatprep.subr.mxu0 0.0
    %1002 = vmatpush2.msra.mxu0 0.0
    %1003 = vmatprep.subr.mxu0 0.0
    %1004 = vmatpush2.msra.mxu0 0.0
    %1005 = vmatprep.subr.mxu0 0.0
    %1006 = vmatpush2.msra.mxu0 0.0
    %1007 = vmatprep.subr.mxu0 0.0
    %1008 = vmatpush2.msra.mxu0 0.0
    %1009 = vmatprep.subr.mxu0 0.0
    %1010 = vmatpush2.msra.mxu0 0.0
    %1011 = vmatprep.subr.mxu0 0.0
    %1012 = vmatpush2.msra.mxu0 0.0
    %1013 = vmatprep.subr.mxu0 0.0
    %1014 = vmatpush2.msra.mxu0 0.0
    %1015 = vmatprep.subr.mxu0 0.0
    %1016 = vmatpush2.msra.mxu0 0.0
    %1017 = vmatprep.subr.mxu0 0.0
    %1018 = vmatpush2.msra.mxu0 0.0
    %1019 = vmatprep.subr.mxu0 0.0
    %1020 = vmatpush2.msra.mxu0 0.0
    %1021 = vmatprep.subr.mxu0 0.0
    %1022 = vmatpush2.msra.mxu0 0.0
    %1023 = vmatprep.subr.mxu0 0.0
    %1024 = vmatpush2.msra.mxu0 0.0
    %1025 = vmatprep.subr.mxu0 0.0
    %1026 = vmatpush2.msra.mxu0 0.0
    %1027 = vmatprep.subr.mxu0 0.0
    %1028 = vmatpush2.msra.mxu0 0.0
    %1029 = vmatprep.subr.mxu0 0.0
    %1030 = vmatpush2.msra.mxu0 0.0
    %1031 = vmatprep.subr.mxu0 0.0
    %1032 = vmatpush2.msra.mxu0 0.0
    %1033 = vmatprep.mubr.f32.mxu0 0.0
    %1034 = vmatmul.mubr.f32.gmra.mxu0 %v968
    %v1035 = vpop.f32.mrf.mxu0
    %v1036 = vadd.f32 0.0, %v1035
    %v1037 = vpop.f32.mrf.mxu0
    %1038 = vdwg.mxu0
    %s1039 = scalar_lea.vmem %s6, 40
    %1040 = vst.msk [vmem:[%s1039] sm:$0xff] %vm259, %v1036
    %v1041 = vmul.f32 %v966, 0.9
    %s1042 = scalar_lea.vmem %s1, 48
    %v1043 = vld [vmem:[%s1042] sm:$0xff]
    %1045 = vset.pattern.permute.xlu0 0
    %1046 = vperm.xlu0 %1045, %v1043
    %v1047 = vpop.permute.xlu0 %1046
    %v1049 = vmul.f32 %v1047, %v105
    %1050 = vmatprep.subr.mxu0 0.0
    %1051 = vmatpush1.msra.mxu0 %v73
    %1052 = vmatprep.subr.mxu0 0.0
    %1053 = vmatpush1.msra.mxu0 %v72
    %1054 = vmatprep.subr.mxu0 0.0
    %1055 = vmatpush1.msra.mxu0 %v71
    %1056 = vmatprep.subr.mxu0 0.0
    %1057 = vmatpush1.msra.mxu0 %v70
    %1058 = vmatprep.subr.mxu0 0.0
    %1059 = vmatpush1.msra.mxu0 %v69
    %1060 = vmatprep.subr.mxu0 0.0
    %1061 = vmatpush1.msra.mxu0 %v68
    %1062 = vmatprep.subr.mxu0 0.0
    %1063 = vmatpush1.msra.mxu0 %v67
    %1064 = vmatprep.subr.mxu0 0.0
    %1065 = vmatpush1.msra.mxu0 %v66
    %1066 = vmatprep.subr.mxu0 0.0
    %1067 = vmatpush1.msra.mxu0 %v65
    %1068 = vmatprep.subr.mxu0 0.0
    %1069 = vmatpush1.msra.mxu0 %v64
    %1070 = vmatprep.subr.mxu0 0.0
    %1071 = vmatpush1.msra.mxu0 %v63
    %1072 = vmatprep.subr.mxu0 0.0
    %1073 = vmatpush1.msra.mxu0 %v62
    %1074 = vmatprep.subr.mxu0 0.0
    %1075 = vmatpush1.msra.mxu0 %v61
    %1076 = vmatprep.subr.mxu0 0.0
    %1077 = vmatpush1.msra.mxu0 %v60
    %1078 = vmatprep.subr.mxu0 0.0
    %1079 = vmatpush1.msra.mxu0 %v59
    %1080 = vmatprep.subr.mxu0 0.0
    %1081 = vmatpush1.msra.mxu0 %v58
    %1082 = vmatprep.subr.mxu0 0.0
    %1083 = vmatpush2.msra.mxu0 0.0
    %1084 = vmatprep.subr.mxu0 0.0
    %1085 = vmatpush2.msra.mxu0 0.0
    %1086 = vmatprep.subr.mxu0 0.0
    %1087 = vmatpush2.msra.mxu0 0.0
    %1088 = vmatprep.subr.mxu0 0.0
    %1089 = vmatpush2.msra.mxu0 0.0
    %1090 = vmatprep.subr.mxu0 0.0
    %1091 = vmatpush2.msra.mxu0 0.0
    %1092 = vmatprep.subr.mxu0 0.0
    %1093 = vmatpush2.msra.mxu0 0.0
    %1094 = vmatprep.subr.mxu0 0.0
    %1095 = vmatpush2.msra.mxu0 0.0
    %1096 = vmatprep.subr.mxu0 0.0
    %1097 = vmatpush2.msra.mxu0 0.0
    %1098 = vmatprep.subr.mxu0 0.0
    %1099 = vmatpush2.msra.mxu0 0.0
    %1100 = vmatprep.subr.mxu0 0.0
    %1101 = vmatpush2.msra.mxu0 0.0
    %1102 = vmatprep.subr.mxu0 0.0
    %1103 = vmatpush2.msra.mxu0 0.0
    %1104 = vmatprep.subr.mxu0 0.0
    %1105 = vmatpush2.msra.mxu0 0.0
    %1106 = vmatprep.subr.mxu0 0.0
    %1107 = vmatpush2.msra.mxu0 0.0
    %1108 = vmatprep.subr.mxu0 0.0
    %1109 = vmatpush2.msra.mxu0 0.0
    %1110 = vmatprep.subr.mxu0 0.0
    %1111 = vmatpush2.msra.mxu0 0.0
    %1112 = vmatprep.subr.mxu0 0.0
    %1113 = vmatpush2.msra.mxu0 0.0
    %1114 = vmatprep.mubr.f32.mxu0 0.0
    %1115 = vmatmul.mubr.f32.gmra.mxu0 %v968
    %v1116 = vpop.f32.mrf.mxu0
    %v1117 = vadd.f32 %v1049, %v1116
    %v1118 = vpop.f32.mrf.mxu0
    %1119 = vdwg.mxu0
    %v1120 = vadd.f32 %v1117, %v182
    %v1121 = vmul.f32 %v1120, 0.1
    %v1122 = vadd.f32 %v1041, %v1121
    %v1123 = vtanh.pop %v1122
    %v1124 = vmax.f32 %v1123, 0.0
    %1125 = vmatprep.subr.mxu0 0.0
    %1126 = vmatpush1.msra.mxu0 %v89
    %1127 = vmatprep.subr.mxu0 0.0
    %1128 = vmatpush1.msra.mxu0 %v88
    %1129 = vmatprep.subr.mxu0 0.0
    %1130 = vmatpush1.msra.mxu0 %v87
    %1131 = vmatprep.subr.mxu0 0.0
    %1132 = vmatpush1.msra.mxu0 %v86
    %1133 = vmatprep.subr.mxu0 0.0
    %1134 = vmatpush1.msra.mxu0 %v85
    %1135 = vmatprep.subr.mxu0 0.0
    %1136 = vmatpush1.msra.mxu0 %v84
    %1137 = vmatprep.subr.mxu0 0.0
    %1138 = vmatpush1.msra.mxu0 %v83
    %1139 = vmatprep.subr.mxu0 0.0
    %1140 = vmatpush1.msra.mxu0 %v82
    %1141 = vmatprep.subr.mxu0 0.0
    %1142 = vmatpush1.msra.mxu0 %v81
    %1143 = vmatprep.subr.mxu0 0.0
    %1144 = vmatpush1.msra.mxu0 %v80
    %1145 = vmatprep.subr.mxu0 0.0
    %1146 = vmatpush1.msra.mxu0 %v79
    %1147 = vmatprep.subr.mxu0 0.0
    %1148 = vmatpush1.msra.mxu0 %v78
    %1149 = vmatprep.subr.mxu0 0.0
    %1150 = vmatpush1.msra.mxu0 %v77
    %1151 = vmatprep.subr.mxu0 0.0
    %1152 = vmatpush1.msra.mxu0 %v76
    %1153 = vmatprep.subr.mxu0 0.0
    %1154 = vmatpush1.msra.mxu0 %v75
    %1155 = vmatprep.subr.mxu0 0.0
    %1156 = vmatpush1.msra.mxu0 %v74
    %1157 = vmatprep.subr.mxu0 0.0
    %1158 = vmatpush2.msra.mxu0 0.0
    %1159 = vmatprep.subr.mxu0 0.0
    %1160 = vmatpush2.msra.mxu0 0.0
    %1161 = vmatprep.subr.mxu0 0.0
    %1162 = vmatpush2.msra.mxu0 0.0
    %1163 = vmatprep.subr.mxu0 0.0
    %1164 = vmatpush2.msra.mxu0 0.0
    %1165 = vmatprep.subr.mxu0 0.0
    %1166 = vmatpush2.msra.mxu0 0.0
    %1167 = vmatprep.subr.mxu0 0.0
    %1168 = vmatpush2.msra.mxu0 0.0
    %1169 = vmatprep.subr.mxu0 0.0
    %1170 = vmatpush2.msra.mxu0 0.0
    %1171 = vmatprep.subr.mxu0 0.0
    %1172 = vmatpush2.msra.mxu0 0.0
    %1173 = vmatprep.subr.mxu0 0.0
    %1174 = vmatpush2.msra.mxu0 0.0
    %1175 = vmatprep.subr.mxu0 0.0
    %1176 = vmatpush2.msra.mxu0 0.0
    %1177 = vmatprep.subr.mxu0 0.0
    %1178 = vmatpush2.msra.mxu0 0.0
    %1179 = vmatprep.subr.mxu0 0.0
    %1180 = vmatpush2.msra.mxu0 0.0
    %1181 = vmatprep.subr.mxu0 0.0
    %1182 = vmatpush2.msra.mxu0 0.0
    %1183 = vmatprep.subr.mxu0 0.0
    %1184 = vmatpush2.msra.mxu0 0.0
    %1185 = vmatprep.subr.mxu0 0.0
    %1186 = vmatpush2.msra.mxu0 0.0
    %1187 = vmatprep.subr.mxu0 0.0
    %1188 = vmatpush2.msra.mxu0 0.0
    %1189 = vmatprep.mubr.f32.mxu0 0.0
    %1190 = vmatmul.mubr.f32.gmra.mxu0 %v1124
    %v1191 = vpop.f32.mrf.mxu0
    %v1192 = vadd.f32 0.0, %v1191
    %v1193 = vpop.f32.mrf.mxu0
    %1194 = vdwg.mxu0
    %s1195 = scalar_lea.vmem %s6, 48
    %1196 = vst.msk [vmem:[%s1195] sm:$0xff] %vm259, %v1192
    %v1197 = vmul.f32 %v1122, 0.9
    %s1198 = scalar_lea.vmem %s1, 56
    %v1199 = vld [vmem:[%s1198] sm:$0xff]
    %1201 = vset.pattern.permute.xlu0 0
    %1202 = vperm.xlu0 %1201, %v1199
    %v1203 = vpop.permute.xlu0 %1202
    %v1205 = vmul.f32 %v1203, %v105
    %1206 = vmatprep.subr.mxu0 0.0
    %1207 = vmatpush1.msra.mxu0 %v73
    %1208 = vmatprep.subr.mxu0 0.0
    %1209 = vmatpush1.msra.mxu0 %v72
    %1210 = vmatprep.subr.mxu0 0.0
    %1211 = vmatpush1.msra.mxu0 %v71
    %1212 = vmatprep.subr.mxu0 0.0
    %1213 = vmatpush1.msra.mxu0 %v70
    %1214 = vmatprep.subr.mxu0 0.0
    %1215 = vmatpush1.msra.mxu0 %v69
    %1216 = vmatprep.subr.mxu0 0.0
    %1217 = vmatpush1.msra.mxu0 %v68
    %1218 = vmatprep.subr.mxu0 0.0
    %1219 = vmatpush1.msra.mxu0 %v67
    %1220 = vmatprep.subr.mxu0 0.0
    %1221 = vmatpush1.msra.mxu0 %v66
    %1222 = vmatprep.subr.mxu0 0.0
    %1223 = vmatpush1.msra.mxu0 %v65
    %1224 = vmatprep.subr.mxu0 0.0
    %1225 = vmatpush1.msra.mxu0 %v64
    %1226 = vmatprep.subr.mxu0 0.0
    %1227 = vmatpush1.msra.mxu0 %v63
    %1228 = vmatprep.subr.mxu0 0.0
    %1229 = vmatpush1.msra.mxu0 %v62
    %1230 = vmatprep.subr.mxu0 0.0
    %1231 = vmatpush1.msra.mxu0 %v61
    %1232 = vmatprep.subr.mxu0 0.0
    %1233 = vmatpush1.msra.mxu0 %v60
    %1234 = vmatprep.subr.mxu0 0.0
    %1235 = vmatpush1.msra.mxu0 %v59
    %1236 = vmatprep.subr.mxu0 0.0
    %1237 = vmatpush1.msra.mxu0 %v58
    %1238 = vmatprep.subr.mxu0 0.0
    %1239 = vmatpush2.msra.mxu0 0.0
    %1240 = vmatprep.subr.mxu0 0.0
    %1241 = vmatpush2.msra.mxu0 0.0
    %1242 = vmatprep.subr.mxu0 0.0
    %1243 = vmatpush2.msra.mxu0 0.0
    %1244 = vmatprep.subr.mxu0 0.0
    %1245 = vmatpush2.msra.mxu0 0.0
    %1246 = vmatprep.subr.mxu0 0.0
    %1247 = vmatpush2.msra.mxu0 0.0
    %1248 = vmatprep.subr.mxu0 0.0
    %1249 = vmatpush2.msra.mxu0 0.0
    %1250 = vmatprep.subr.mxu0 0.0
    %1251 = vmatpush2.msra.mxu0 0.0
    %1252 = vmatprep.subr.mxu0 0.0
    %1253 = vmatpush2.msra.mxu0 0.0
    %1254 = vmatprep.subr.mxu0 0.0
    %1255 = vmatpush2.msra.mxu0 0.0
    %1256 = vmatprep.subr.mxu0 0.0
    %1257 = vmatpush2.msra.mxu0 0.0
    %1258 = vmatprep.subr.mxu0 0.0
    %1259 = vmatpush2.msra.mxu0 0.0
    %1260 = vmatprep.subr.mxu0 0.0
    %1261 = vmatpush2.msra.mxu0 0.0
    %1262 = vmatprep.subr.mxu0 0.0
    %1263 = vmatpush2.msra.mxu0 0.0
    %1264 = vmatprep.subr.mxu0 0.0
    %1265 = vmatpush2.msra.mxu0 0.0
    %1266 = vmatprep.subr.mxu0 0.0
    %1267 = vmatpush2.msra.mxu0 0.0
    %1268 = vmatprep.subr.mxu0 0.0
    %1269 = vmatpush2.msra.mxu0 0.0
    %1270 = vmatprep.mubr.f32.mxu0 0.0
    %1271 = vmatmul.mubr.f32.gmra.mxu0 %v1124
    %v1272 = vpop.f32.mrf.mxu0
    %v1273 = vadd.f32 %v1205, %v1272
    %v1274 = vpop.f32.mrf.mxu0
    %1275 = vdwg.mxu0
    %v1276 = vadd.f32 %v1273, %v182
    %v1277 = vmul.f32 %v1276, 0.1
    %v1278 = vadd.f32 %v1197, %v1277
    %v1279 = vtanh.pop %v1278
    %v1280 = vmax.f32 %v1279, 0.0
    %1281 = vmatprep.subr.mxu0 0.0
    %1282 = vmatpush1.msra.mxu0 %v89
    %1283 = vmatprep.subr.mxu0 0.0
    %1284 = vmatpush1.msra.mxu0 %v88
    %1285 = vmatprep.subr.mxu0 0.0
    %1286 = vmatpush1.msra.mxu0 %v87
    %1287 = vmatprep.subr.mxu0 0.0
    %1288 = vmatpush1.msra.mxu0 %v86
    %1289 = vmatprep.subr.mxu0 0.0
    %1290 = vmatpush1.msra.mxu0 %v85
    %1291 = vmatprep.subr.mxu0 0.0
    %1292 = vmatpush1.msra.mxu0 %v84
    %1293 = vmatprep.subr.mxu0 0.0
    %1294 = vmatpush1.msra.mxu0 %v83
    %1295 = vmatprep.subr.mxu0 0.0
    %1296 = vmatpush1.msra.mxu0 %v82
    %1297 = vmatprep.subr.mxu0 0.0
    %1298 = vmatpush1.msra.mxu0 %v81
    %1299 = vmatprep.subr.mxu0 0.0
    %1300 = vmatpush1.msra.mxu0 %v80
    %1301 = vmatprep.subr.mxu0 0.0
    %1302 = vmatpush1.msra.mxu0 %v79
    %1303 = vmatprep.subr.mxu0 0.0
    %1304 = vmatpush1.msra.mxu0 %v78
    %1305 = vmatprep.subr.mxu0 0.0
    %1306 = vmatpush1.msra.mxu0 %v77
    %1307 = vmatprep.subr.mxu0 0.0
    %1308 = vmatpush1.msra.mxu0 %v76
    %1309 = vmatprep.subr.mxu0 0.0
    %1310 = vmatpush1.msra.mxu0 %v75
    %1311 = vmatprep.subr.mxu0 0.0
    %1312 = vmatpush1.msra.mxu0 %v74
    %1313 = vmatprep.subr.mxu0 0.0
    %1314 = vmatpush2.msra.mxu0 0.0
    %1315 = vmatprep.subr.mxu0 0.0
    %1316 = vmatpush2.msra.mxu0 0.0
    %1317 = vmatprep.subr.mxu0 0.0
    %1318 = vmatpush2.msra.mxu0 0.0
    %1319 = vmatprep.subr.mxu0 0.0
    %1320 = vmatpush2.msra.mxu0 0.0
    %1321 = vmatprep.subr.mxu0 0.0
    %1322 = vmatpush2.msra.mxu0 0.0
    %1323 = vmatprep.subr.mxu0 0.0
    %1324 = vmatpush2.msra.mxu0 0.0
    %1325 = vmatprep.subr.mxu0 0.0
    %1326 = vmatpush2.msra.mxu0 0.0
    %1327 = vmatprep.subr.mxu0 0.0
    %1328 = vmatpush2.msra.mxu0 0.0
    %1329 = vmatprep.subr.mxu0 0.0
    %1330 = vmatpush2.msra.mxu0 0.0
    %1331 = vmatprep.subr.mxu0 0.0
    %1332 = vmatpush2.msra.mxu0 0.0
    %1333 = vmatprep.subr.mxu0 0.0
    %1334 = vmatpush2.msra.mxu0 0.0
    %1335 = vmatprep.subr.mxu0 0.0
    %1336 = vmatpush2.msra.mxu0 0.0
    %1337 = vmatprep.subr.mxu0 0.0
    %1338 = vmatpush2.msra.mxu0 0.0
    %1339 = vmatprep.subr.mxu0 0.0
    %1340 = vmatpush2.msra.mxu0 0.0
    %1341 = vmatprep.subr.mxu0 0.0
    %1342 = vmatpush2.msra.mxu0 0.0
    %1343 = vmatprep.subr.mxu0 0.0
    %1344 = vmatpush2.msra.mxu0 0.0
    %1345 = vmatprep.mubr.f32.mxu0 0.0
    %1346 = vmatmul.mubr.f32.gmra.mxu0 %v1280
    %v1347 = vpop.f32.mrf.mxu0
    %v1348 = vadd.f32 0.0, %v1347
    %v1349 = vpop.f32.mrf.mxu0
    %1350 = vdwg.mxu0
    %s1351 = scalar_lea.vmem %s6, 56
    %1352 = vst.msk [vmem:[%s1351] sm:$0xff] %vm259, %v1348
    %1353 = vst [vmem:[#allocation2] sm:$0xff] %v1278
    // Predicated region
    $region38: #{tpu_custom_call.1} parent=1 // pred_check
      _
    $region39: #{tpu_custom_call.1} parent=1 // pred_check_branch
      %1355 = sbr.rel (0) target = $region41
    $region40: #{tpu_custom_call.1} parent=1 // pred_region
      _
    $region41: #{tpu_custom_call.1} parent=1 // pred_fallthru
      _
    // Predicated region
    $region42: #{tpu_custom_call.1} parent=1 // pred_check
      _
    $region43: #{tpu_custom_call.1} parent=1 // pred_check_branch
      %1357 = sbr.rel (0) target = $region45
    $region44: #{tpu_custom_call.1} parent=1 // pred_region
      _
    $region45: #{tpu_custom_call.1} parent=1 // pred_fallthru
      _
    %1358 = vsyncpa [#allocation4], 1
    %1359 = vsyncpa [#allocation6], 1

</llo_original>
